<compile_context>
chip_gen: v6e
topology: v6e:2x2x1
jax: 0.10.0
libtpu: 0.0.40
codegen_flags: <defaults>
</compile_context>

<pallas_src>
import jax
import jax.numpy as jnp
from jax.experimental import pallas as pl
from jax.experimental.pallas import tpu as pltpu


def _round_up(v, m):
    return (v + m - 1) // m * m


def _pick_channel_tile(C, HW, itemsize):
    """Largest channel tile tc (tc == C, or a divisor of C that is a multiple
    of 8 for BlockSpec legality) whose padded (tc, HW) VMEM block stays under
    ~8 MiB.  Returns (tc, padded_block_bytes)."""
    sub = max(8, 32 // itemsize)          # sublane packing: f32->8, bf16->16, int8->32
    lanes = _round_up(HW, 128)
    budget = 8 << 20                      # ~8 MiB per in-flight x block

    def padded_bytes(t):
        return _round_up(t, sub) * lanes * itemsize

    cands = sorted(
        {d for d in range(1, C + 1) if C % d == 0 and (d == C or d % 8 == 0)},
        reverse=True)
    for d in cands:
        if padded_bytes(d) <= budget:
            return d, padded_bytes(d)
    d = min(cands)                        # nothing fits the budget; smallest legal tile
    return d, padded_bytes(d)


def spatial_attention(x, w, *, kernel_size=7):
    """x: (B, C, H, W) NCHW.  w: (1, 2, K, K) Conv2d(2,1,K,pad=(K-1)//2,bias=False) weight.

    Returns sigmoid(conv(concat(mean_c(x), max_c(x)))) of shape (B, 1, H, W).
    """
    B, C, H, W = x.shape
    K = kernel_size
    PAD = (K - 1) // 2
    assert w.shape == (1, 2, K, K), w.shape

    HW = H * W
    itemsize = jnp.dtype(x.dtype).itemsize
    out_itemsize = itemsize

    # Conv taps as a flat 1-D f32 table resident in SMEM (1-D packs tightly).
    w_flat = jnp.asarray(w, jnp.float32).reshape(2 * K * K)

    tc, x_block_bytes = _pick_channel_tile(C, HW, itemsize)
    nc = C // tc
    SUB = 8                               # rows per single-pass reduction chunk
    nfull, rem = tc // SUB, tc % SUB

    # Flat zero-bordered conv buffer: PAD*(W+1) zeros on either side of each
    # H*W map so every (kh, kw) tap becomes a static flat shift of the map.
    LBUF = HW + 2 * PAD * (W + 1)
    base = PAD * (W + 1)

    def kernel(x_ref, w_ref, o_ref, sum_acc, max_acc, buf_ref):
        ci = pl.program_id(1)

        @pl.when(ci == 0)
        def _init():
            sum_acc[...] = jnp.zeros_like(sum_acc)
            max_acc[...] = jnp.full_like(max_acc, -jnp.inf)

        # ---- single-pass channel reduction: each slab is loaded once and
        # feeds BOTH the running sum and the running max (VALU add/max).
        s = sum_acc[...]                  # (1, HW) f32
        m = max_acc[...]                  # (1, HW) f32

        def body(i, carry):
            cs, cm = carry
            start = pl.multiple_of(i * SUB, SUB)
            blk = x_ref[pl.ds(start, SUB), :]            # (SUB, HW) native dtype
            cs = cs + jnp.sum(blk, axis=0, keepdims=True, dtype=jnp.float32)
            cm = jnp.maximum(
                cm, jnp.max(blk, axis=0, keepdims=True).astype(jnp.float32))
            return cs, cm

        if nfull > 0:
            s, m = jax.lax.fori_loop(0, nfull, body, (s, m),
                                     unroll=(nfull <= 8))
        if rem > 0:
            blk = x_ref[pl.ds(nfull * SUB, rem), :]      # (rem, HW)
            s = s + jnp.sum(blk, axis=0, keepdims=True, dtype=jnp.float32)
            m = jnp.maximum(
                m, jnp.max(blk, axis=0, keepdims=True).astype(jnp.float32))

        sum_acc[...] = s
        max_acc[...] = m

        # ---- finalize: fused 7x7 conv (flat, lane-dense MACs) + sigmoid
        @pl.when(ci == nc - 1)
        def _finalize():
            avg = s * jnp.float32(1.0 / C)               # true mean over all C
            mx = m

            # Zero-bordered flat copies of the two reduced maps (one dense
            # slice write per channel, no (H, W) re-layout).
            buf_ref[...] = jnp.zeros_like(buf_ref)
            buf_ref[pl.ds(0, 1), pl.ds(base, HW)] = avg
            buf_ref[pl.ds(1, 1), pl.ds(base, HW)] = mx

            # Column index (within a row) of every flat output position; used
            # to mask row-wrap contributions of the lane (kw) shifts.
            col = jax.lax.broadcasted_iota(jnp.int32, (1, HW), 1) % W

            acc = jnp.zeros((1, HW), jnp.float32)
            for kw in range(K):
                dw = kw - PAD
                mask = jnp.logical_and(col + dw >= 0, col + dw < W)
                part = jnp.zeros((1, HW), jnp.float32)
                for c in range(2):
                    for kh in range(K):
                        t = w_ref[c * K * K + kh * K + kw]      # SMEM scalar
                        start = base + (kh - PAD) * W + dw      # static offset
                        part = part + t * buf_ref[pl.ds(c, 1), pl.ds(start, HW)]
                acc = acc + jnp.where(mask, part, 0.0)

            o_ref[0] = jax.nn.sigmoid(acc).astype(o_ref.dtype)  # dense (1, HW)

    # ---- VMEM plan (padded footprints) and compiler params
    lanes_hw = _round_up(HW, 128)
    out_block_bytes = 8 * lanes_hw * out_itemsize
    scratch_bytes = (2 * 8 * lanes_hw + 8 * _round_up(LBUF, 128)) * 4
    need = 2 * x_block_bytes + 2 * out_block_bytes + scratch_bytes
    vmem_limit = max(need + (8 << 20), 32 << 20)
    vmem_limit = min(vmem_limit, 48 << 20)     # headroom under v7x's 64 MiB VMEM
    vmem_limit = max(vmem_limit, need + (2 << 20))

    cost = pl.CostEstimate(
        flops=2 * B * C * HW + 4 * B * HW * K * K,
        transcendentals=B * HW,
        bytes_accessed=B * C * HW * itemsize + B * HW * out_itemsize
        + int(w_flat.size) * 4,
    )

    x_flat = x.reshape(B, C, HW)               # free: NCHW is contiguous

    out_flat = pl.pallas_call(
        kernel,
        out_shape=jax.ShapeDtypeStruct((B, 1, HW), x.dtype),
        grid_spec=pltpu.PrefetchScalarGridSpec(
            num_scalar_prefetch=0,
            grid=(B, nc),
            in_specs=[
                pl.BlockSpec((pl.Squeezed(), tc, HW), lambda b, c: (b, c, 0)),
                pl.BlockSpec(memory_space=pltpu.MemorySpace.SMEM),   # conv taps
            ],
            out_specs=pl.BlockSpec((1, 1, HW), lambda b, c: (b, 0, 0)),
            scratch_shapes=[
                pltpu.VMEM((1, HW), jnp.float32),      # running sum (flat)
                pltpu.VMEM((1, HW), jnp.float32),      # running max (flat)
                pltpu.VMEM((2, LBUF), jnp.float32),    # zero-bordered conv buffer
            ],
        ),
        compiler_params=pltpu.CompilerParams(
            dimension_semantics=("parallel", "arbitrary"),
            vmem_limit_bytes=int(vmem_limit)),
        cost_estimate=cost,
    )(x_flat, w_flat)

    return out_flat.reshape(B, 1, H, W)


def _reference(x, w, kernel_size=7):
    # pure-JAX reference of the PyTorch forward
    pad = (kernel_size - 1) // 2
    avg = jnp.mean(x, axis=1, keepdims=True)
    mx = jnp.max(x, axis=1, keepdims=True)
    cat = jnp.concatenate([avg, mx], axis=1)                  # (B, 2, H, W)
    y = jax.lax.conv_general_dilated(
        cat, w, window_strides=(1, 1),
        padding=((pad, pad), (pad, pad)),
        dimension_numbers=("NCHW", "OIHW", "NCHW"))
    return jax.nn.sigmoid(y)                                  # (B, 1, H, W)


if __name__ == "__main__":
    B, C, H, W = 2, 4, 16, 16
    K = 7

    key = jax.random.PRNGKey(0)
    kx, kweight = jax.random.split(key)
    x = jax.random.normal(kx, (B, C, H, W), dtype=jnp.float32)
    # deterministic stand-in for Conv2d(2, 1, kernel_size=7, padding=3, bias=False).weight
    w = jax.random.normal(kweight, (1, 2, K, K), dtype=jnp.float32) * 0.1

    out = spatial_attention(x, w, kernel_size=K)
    out = jax.block_until_ready(out)

    ref = _reference(x, w, kernel_size=K)
    assert out.shape == (B, 1, H, W), out.shape
    assert jnp.allclose(out, ref, atol=1e-5, rtol=1e-5), (out, ref)

    print("KERNEL_OK")
</pallas_src>

<mosaic_0001>
module attributes {stable_mosaic.version = 11 : i64} {
  func.func @kernel(%arg0: i32, %arg1: i32, %arg2: memref<1x4x256xf32, #tpu.memory_space<vmem>>, %arg3: memref<98xf32, #tpu.memory_space<smem>>, %arg4: memref<1x1x256xf32, #tpu.memory_space<vmem>>, %arg5: memref<1x256xf32, #tpu.memory_space<vmem>>, %arg6: memref<1x256xf32, #tpu.memory_space<vmem>>, %arg7: memref<2x358xf32, #tpu.memory_space<vmem>>) attributes {dimension_semantics = [#tpu.dimension_semantics<parallel>, #tpu.dimension_semantics<arbitrary>], iteration_bounds = array<i64: 2, 1>, scalar_prefetch = 0 : i64, scratch_operands = 3 : i64, tpu.core_type = #tpu.core_type<tc>, window_params = [{transform_indices = @transform_0, window_bounds = array<i64: 1, 4, 256>}, {transform_indices = @transform_1, window_bounds = array<i64: 98>}, {transform_indices = @transform_2, window_bounds = array<i64: 1, 1, 256>}]} {
    %c0_i32 = arith.constant 0 : i32
    %0 = arith.cmpi eq, %arg1, %c0_i32 : i32
    %1 = arith.extui %0 : i1 to i32
    %c0_i32_0 = arith.constant 0 : i32
    %2 = arith.cmpi ne, %1, %c0_i32_0 : i32
    scf.if %2 {
      %cst_14 = arith.constant 0.000000e+00 : f32
      %18 = vector.broadcast %cst_14 : f32 to vector<1x256xf32>
      %c0_15 = arith.constant 0 : index
      %c0_16 = arith.constant 0 : index
      %19 = vector.load %arg5[%c0_15, %c0_16] : memref<1x256xf32, #tpu.memory_space<vmem>>, vector<1x256xf32>
      tpu.vector_store %arg5[%c0_15, %c0_16], %18 {strides = array<i32>} : memref<1x256xf32, #tpu.memory_space<vmem>>, vector<1x256xf32>,
      %cst_17 = arith.constant 0xFF800000 : f32
      %20 = vector.broadcast %cst_17 : f32 to vector<1x256xf32>
      %c0_18 = arith.constant 0 : index
      %c0_19 = arith.constant 0 : index
      %21 = vector.load %arg6[%c0_18, %c0_19] : memref<1x256xf32, #tpu.memory_space<vmem>>, vector<1x256xf32>
      tpu.vector_store %arg6[%c0_18, %c0_19], %20 {strides = array<i32>} : memref<1x256xf32, #tpu.memory_space<vmem>>, vector<1x256xf32>,
    } else {
    }
    %c0 = arith.constant 0 : index
    %c0_1 = arith.constant 0 : index
    %3 = vector.load %arg5[%c0, %c0_1] : memref<1x256xf32, #tpu.memory_space<vmem>>, vector<1x256xf32>
    %c0_2 = arith.constant 0 : index
    %c0_3 = arith.constant 0 : index
    %4 = vector.load %arg6[%c0_2, %c0_3] : memref<1x256xf32, #tpu.memory_space<vmem>>, vector<1x256xf32>
    %c0_4 = arith.constant 0 : index
    %c0_5 = arith.constant 0 : index
    %c0_6 = arith.constant 0 : index
    %5 = vector.load %arg2[%c0_4, %c0_5, %c0_6] : memref<1x4x256xf32, #tpu.memory_space<vmem>>, vector<1x4x256xf32>
    %6 = vector.shape_cast %5 : vector<1x4x256xf32> to vector<4x256xf32>
    %cst = arith.constant dense<0.000000e+00> : vector<256xf32>
    %7 = vector.multi_reduction <add>, %6, %cst [0] : vector<4x256xf32> to vector<256xf32>
    %8 = vector.shape_cast %7 : vector<256xf32> to vector<1x256xf32>
    %9 = arith.addf %3, %8 : vector<1x256xf32>
    %cst_7 = arith.constant dense<0xFF800000> : vector<256xf32>
    %10 = vector.multi_reduction <maximumf>, %6, %cst_7 [0] : vector<4x256xf32> to vector<256xf32>
    %11 = vector.shape_cast %10 : vector<256xf32> to vector<1x256xf32>
    %12 = arith.maximumf %4, %11 : vector<1x256xf32>
    %c0_8 = arith.constant 0 : index
    %c0_9 = arith.constant 0 : index
    %13 = vector.load %arg5[%c0_8, %c0_9] : memref<1x256xf32, #tpu.memory_space<vmem>>, vector<1x256xf32>
    tpu.vector_store %arg5[%c0_8, %c0_9], %9 {strides = array<i32>} : memref<1x256xf32, #tpu.memory_space<vmem>>, vector<1x256xf32>,
    %c0_10 = arith.constant 0 : index
    %c0_11 = arith.constant 0 : index
    %14 = vector.load %arg6[%c0_10, %c0_11] : memref<1x256xf32, #tpu.memory_space<vmem>>, vector<1x256xf32>
    tpu.vector_store %arg6[%c0_10, %c0_11], %12 {strides = array<i32>} : memref<1x256xf32, #tpu.memory_space<vmem>>, vector<1x256xf32>,
    %c0_i32_12 = arith.constant 0 : i32
    %15 = arith.cmpi eq, %arg1, %c0_i32_12 : i32
    %16 = arith.extui %15 : i1 to i32
    %c0_i32_13 = arith.constant 0 : i32
    %17 = arith.cmpi ne, %16, %c0_i32_13 : i32
    scf.if %17 {
      %cst_14 = arith.constant 2.500000e-01 : f32
      %18 = vector.broadcast %cst_14 : f32 to vector<1x256xf32>
      %19 = arith.mulf %9, %18 : vector<1x256xf32>
      %cst_15 = arith.constant 0.000000e+00 : f32
      %20 = vector.broadcast %cst_15 : f32 to vector<2x358xf32>
      %c0_16 = arith.constant 0 : index
      %c0_17 = arith.constant 0 : index
      %21 = vector.load %arg7[%c0_16, %c0_17] : memref<2x358xf32, #tpu.memory_space<vmem>>, vector<2x358xf32>
      tpu.vector_store %arg7[%c0_16, %c0_17], %20 {strides = array<i32>} : memref<2x358xf32, #tpu.memory_space<vmem>>, vector<2x358xf32>,
      %c0_18 = arith.constant 0 : index
      %c51 = arith.constant 51 : index
      %22 = vector.load %arg7[%c0_18, %c51] : memref<2x358xf32, #tpu.memory_space<vmem>>, vector<1x256xf32>
      tpu.vector_store %arg7[%c0_18, %c51], %19 {strides = array<i32>} : memref<2x358xf32, #tpu.memory_space<vmem>>, vector<1x256xf32>,
      %c1 = arith.constant 1 : index
      %c51_19 = arith.constant 51 : index
      %23 = vector.load %arg7[%c1, %c51_19] : memref<2x358xf32, #tpu.memory_space<vmem>>, vector<1x256xf32>
      tpu.vector_store %arg7[%c1, %c51_19], %12 {strides = array<i32>} : memref<2x358xf32, #tpu.memory_space<vmem>>, vector<1x256xf32>,
      %24 = tpu.iota {dimensions = array<i32: 1>} : vector<1x256xi32>
      %c16_i32 = arith.constant 16 : i32
      %c0_i32_20 = arith.constant 0 : i32
      %25 = arith.cmpi eq, %c16_i32, %c0_i32_20 : i32
      %c1_i32 = arith.constant 1 : i32
      %26 = arith.select %25, %c1_i32, %c16_i32 : i32
      %27 = vector.broadcast %26 : i32 to vector<1x256xi32>
      %28 = arith.remsi %24, %27 : vector<1x256xi32>
      %c0_i32_21 = arith.constant 0 : i32
      %29 = vector.broadcast %c0_i32_21 : i32 to vector<1x256xi32>
      %30 = arith.cmpi ne, %28, %29 : vector<1x256xi32>
      %c0_i32_22 = arith.constant 0 : i32
      %31 = vector.broadcast %c0_i32_22 : i32 to vector<1x256xi32>
      %32 = arith.cmpi slt, %28, %31 : vector<1x256xi32>
      %c0_i32_23 = arith.constant 0 : i32
      %33 = arith.cmpi slt, %26, %c0_i32_23 : i32
      %34 = vector.broadcast %33 : i1 to vector<1x256xi1>
      %35 = vector.broadcast %34 : vector<1x256xi1> to vector<1x256xi1>
      %36 = arith.xori %32, %35 : vector<1x256xi1>
      %37 = arith.andi %36, %30 : vector<1x256xi1>
      %38 = vector.broadcast %26 : i32 to vector<1x256xi32>
      %39 = arith.addi %28, %38 : vector<1x256xi32>
      %40 = arith.select %37, %39, %28 : vector<1x256xi1>, vector<1x256xi32>
      %cst_24 = arith.constant 0.000000e+00 : f32
      %41 = vector.broadcast %cst_24 : f32 to vector<1x256xf32>
      %c-3_i32 = arith.constant -3 : i32
      %42 = vector.broadcast %c-3_i32 : i32 to vector<1x256xi32>
      %43 = arith.addi %40, %42 : vector<1x256xi32>
      %c0_i32_25 = arith.constant 0 : i32
      %44 = vector.broadcast %c0_i32_25 : i32 to vector<1x256xi32>
      %45 = arith.cmpi sge, %43, %44 : vector<1x256xi32>
      %c-3_i32_26 = arith.constant -3 : i32
      %46 = vector.broadcast %c-3_i32_26 : i32 to vector<1x256xi32>
      %47 = arith.addi %40, %46 : vector<1x256xi32>
      %c16_i32_27 = arith.constant 16 : i32
      %48 = vector.broadcast %c16_i32_27 : i32 to vector<1x256xi32>
      %49 = arith.cmpi slt, %47, %48 : vector<1x256xi32>
      %50 = arith.andi %45, %49 : vector<1x256xi1>
      %cst_28 = arith.constant 0.000000e+00 : f32
      %51 = vector.broadcast %cst_28 : f32 to vector<1x256xf32>
      %c0_29 = arith.constant 0 : index
      %52 = memref.load %arg3[%c0_29] : memref<98xf32, #tpu.memory_space<smem>>
      %c0_30 = arith.constant 0 : index
      %c0_31 = arith.constant 0 : index
      %53 = vector.load %arg7[%c0_30, %c0_31] : memref<2x358xf32, #tpu.memory_space<vmem>>, vector<1x256xf32>
      %54 = vector.broadcast %52 : f32 to vector<1x256xf32>
      %55 = arith.mulf %54, %53 : vector<1x256xf32>
      %56 = arith.addf %51, %55 : vector<1x256xf32>
      %c7 = arith.constant 7 : index
      %57 = memref.load %arg3[%c7] : memref<98xf32, #tpu.memory_space<smem>>
      %c0_32 = arith.constant 0 : index
      %c16 = arith.constant 16 : index
      %58 = vector.load %arg7[%c0_32, %c16] : memref<2x358xf32, #tpu.memory_space<vmem>>, vector<1x256xf32>
      %59 = vector.broadcast %57 : f32 to vector<1x256xf32>
      %60 = arith.mulf %59, %58 : vector<1x256xf32>
      %61 = arith.addf %56, %60 : vector<1x256xf32>
      %c14 = arith.constant 14 : index
      %62 = memref.load %arg3[%c14] : memref<98xf32, #tpu.memory_space<smem>>
      %c0_33 = arith.constant 0 : index
      %c32 = arith.constant 32 : index
      %63 = vector.load %arg7[%c0_33, %c32] : memref<2x358xf32, #tpu.memory_space<vmem>>, vector<1x256xf32>
      %64 = vector.broadcast %62 : f32 to vector<1x256xf32>
      %65 = arith.mulf %64, %63 : vector<1x256xf32>
      %66 = arith.addf %61, %65 : vector<1x256xf32>
      %c21 = arith.constant 21 : index
      %67 = memref.load %arg3[%c21] : memref<98xf32, #tpu.memory_space<smem>>
      %c0_34 = arith.constant 0 : index
      %c48 = arith.constant 48 : index
      %68 = vector.load %arg7[%c0_34, %c48] : memref<2x358xf32, #tpu.memory_space<vmem>>, vector<1x256xf32>
      %69 = vector.broadcast %67 : f32 to vector<1x256xf32>
      %70 = arith.mulf %69, %68 : vector<1x256xf32>
      %71 = arith.addf %66, %70 : vector<1x256xf32>
      %c28 = arith.constant 28 : index
      %72 = memref.load %arg3[%c28] : memref<98xf32, #tpu.memory_space<smem>>
      %c0_35 = arith.constant 0 : index
      %c64 = arith.constant 64 : index
      %73 = vector.load %arg7[%c0_35, %c64] : memref<2x358xf32, #tpu.memory_space<vmem>>, vector<1x256xf32>
      %74 = vector.broadcast %72 : f32 to vector<1x256xf32>
      %75 = arith.mulf %74, %73 : vector<1x256xf32>
      %76 = arith.addf %71, %75 : vector<1x256xf32>
      %c35 = arith.constant 35 : index
      %77 = memref.load %arg3[%c35] : memref<98xf32, #tpu.memory_space<smem>>
      %c0_36 = arith.constant 0 : index
      %c80 = arith.constant 80 : index
      %78 = vector.load %arg7[%c0_36, %c80] : memref<2x358xf32, #tpu.memory_space<vmem>>, vector<1x256xf32>
      %79 = vector.broadcast %77 : f32 to vector<1x256xf32>
      %80 = arith.mulf %79, %78 : vector<1x256xf32>
      %81 = arith.addf %76, %80 : vector<1x256xf32>
      %c42 = arith.constant 42 : index
      %82 = memref.load %arg3[%c42] : memref<98xf32, #tpu.memory_space<smem>>
      %c0_37 = arith.constant 0 : index
      %c96 = arith.constant 96 : index
      %83 = vector.load %arg7[%c0_37, %c96] : memref<2x358xf32, #tpu.memory_space<vmem>>, vector<1x256xf32>
      %84 = vector.broadcast %82 : f32 to vector<1x256xf32>
      %85 = arith.mulf %84, %83 : vector<1x256xf32>
      %86 = arith.addf %81, %85 : vector<1x256xf32>
      %c49 = arith.constant 49 : index
      %87 = memref.load %arg3[%c49] : memref<98xf32, #tpu.memory_space<smem>>
      %c1_38 = arith.constant 1 : index
      %c0_39 = arith.constant 0 : index
      %88 = vector.load %arg7[%c1_38, %c0_39] : memref<2x358xf32, #tpu.memory_space<vmem>>, vector<1x256xf32>
      %89 = vector.broadcast %87 : f32 to vector<1x256xf32>
      %90 = arith.mulf %89, %88 : vector<1x256xf32>
      %91 = arith.addf %86, %90 : vector<1x256xf32>
      %c56 = arith.constant 56 : index
      %92 = memref.load %arg3[%c56] : memref<98xf32, #tpu.memory_space<smem>>
      %c1_40 = arith.constant 1 : index
      %c16_41 = arith.constant 16 : index
      %93 = vector.load %arg7[%c1_40, %c16_41] : memref<2x358xf32, #tpu.memory_space<vmem>>, vector<1x256xf32>
      %94 = vector.broadcast %92 : f32 to vector<1x256xf32>
      %95 = arith.mulf %94, %93 : vector<1x256xf32>
      %96 = arith.addf %91, %95 : vector<1x256xf32>
      %c63 = arith.constant 63 : index
      %97 = memref.load %arg3[%c63] : memref<98xf32, #tpu.memory_space<smem>>
      %c1_42 = arith.constant 1 : index
      %c32_43 = arith.constant 32 : index
      %98 = vector.load %arg7[%c1_42, %c32_43] : memref<2x358xf32, #tpu.memory_space<vmem>>, vector<1x256xf32>
      %99 = vector.broadcast %97 : f32 to vector<1x256xf32>
      %100 = arith.mulf %99, %98 : vector<1x256xf32>
      %101 = arith.addf %96, %100 : vector<1x256xf32>
      %c70 = arith.constant 70 : index
      %102 = memref.load %arg3[%c70] : memref<98xf32, #tpu.memory_space<smem>>
      %c1_44 = arith.constant 1 : index
      %c48_45 = arith.constant 48 : index
      %103 = vector.load %arg7[%c1_44, %c48_45] : memref<2x358xf32, #tpu.memory_space<vmem>>, vector<1x256xf32>
      %104 = vector.broadcast %102 : f32 to vector<1x256xf32>
      %105 = arith.mulf %104, %103 : vector<1x256xf32>
      %106 = arith.addf %101, %105 : vector<1x256xf32>
      %c77 = arith.constant 77 : index
      %107 = memref.load %arg3[%c77] : memref<98xf32, #tpu.memory_space<smem>>
      %c1_46 = arith.constant 1 : index
      %c64_47 = arith.constant 64 : index
      %108 = vector.load %arg7[%c1_46, %c64_47] : memref<2x358xf32, #tpu.memory_space<vmem>>, vector<1x256xf32>
      %109 = vector.broadcast %107 : f32 to vector<1x256xf32>
      %110 = arith.mulf %109, %108 : vector<1x256xf32>
      %111 = arith.addf %106, %110 : vector<1x256xf32>
      %c84 = arith.constant 84 : index
      %112 = memref.load %arg3[%c84] : memref<98xf32, #tpu.memory_space<smem>>
      %c1_48 = arith.constant 1 : index
      %c80_49 = arith.constant 80 : index
      %113 = vector.load %arg7[%c1_48, %c80_49] : memref<2x358xf32, #tpu.memory_space<vmem>>, vector<1x256xf32>
      %114 = vector.broadcast %112 : f32 to vector<1x256xf32>
      %115 = arith.mulf %114, %113 : vector<1x256xf32>
      %116 = arith.addf %111, %115 : vector<1x256xf32>
      %c91 = arith.constant 91 : index
      %117 = memref.load %arg3[%c91] : memref<98xf32, #tpu.memory_space<smem>>
      %c1_50 = arith.constant 1 : index
      %c96_51 = arith.constant 96 : index
      %118 = vector.load %arg7[%c1_50, %c96_51] : memref<2x358xf32, #tpu.memory_space<vmem>>, vector<1x256xf32>
      %119 = vector.broadcast %117 : f32 to vector<1x256xf32>
      %120 = arith.mulf %119, %118 : vector<1x256xf32>
      %121 = arith.addf %116, %120 : vector<1x256xf32>
      %cst_52 = arith.constant 0.000000e+00 : f32
      %122 = vector.broadcast %cst_52 : f32 to vector<1x256xf32>
      %123 = arith.select %50, %121, %122 : vector<1x256xi1>, vector<1x256xf32>
      %124 = arith.addf %41, %123 : vector<1x256xf32>
      %c-2_i32 = arith.constant -2 : i32
      %125 = vector.broadcast %c-2_i32 : i32 to vector<1x256xi32>
      %126 = arith.addi %40, %125 : vector<1x256xi32>
      %c0_i32_53 = arith.constant 0 : i32
      %127 = vector.broadcast %c0_i32_53 : i32 to vector<1x256xi32>
      %128 = arith.cmpi sge, %126, %127 : vector<1x256xi32>
      %c-2_i32_54 = arith.constant -2 : i32
      %129 = vector.broadcast %c-2_i32_54 : i32 to vector<1x256xi32>
      %130 = arith.addi %40, %129 : vector<1x256xi32>
      %c16_i32_55 = arith.constant 16 : i32
      %131 = vector.broadcast %c16_i32_55 : i32 to vector<1x256xi32>
      %132 = arith.cmpi slt, %130, %131 : vector<1x256xi32>
      %133 = arith.andi %128, %132 : vector<1x256xi1>
      %cst_56 = arith.constant 0.000000e+00 : f32
      %134 = vector.broadcast %cst_56 : f32 to vector<1x256xf32>
      %c1_57 = arith.constant 1 : index
      %135 = memref.load %arg3[%c1_57] : memref<98xf32, #tpu.memory_space<smem>>
      %c0_58 = arith.constant 0 : index
      %c1_59 = arith.constant 1 : index
      %136 = vector.load %arg7[%c0_58, %c1_59] : memref<2x358xf32, #tpu.memory_space<vmem>>, vector<1x256xf32>
      %137 = vector.broadcast %135 : f32 to vector<1x256xf32>
      %138 = arith.mulf %137, %136 : vector<1x256xf32>
      %139 = arith.addf %134, %138 : vector<1x256xf32>
      %c8 = arith.constant 8 : index
      %140 = memref.load %arg3[%c8] : memref<98xf32, #tpu.memory_space<smem>>
      %c0_60 = arith.constant 0 : index
      %c17 = arith.constant 17 : index
      %141 = vector.load %arg7[%c0_60, %c17] : memref<2x358xf32, #tpu.memory_space<vmem>>, vector<1x256xf32>
      %142 = vector.broadcast %140 : f32 to vector<1x256xf32>
      %143 = arith.mulf %142, %141 : vector<1x256xf32>
      %144 = arith.addf %139, %143 : vector<1x256xf32>
      %c15 = arith.constant 15 : index
      %145 = memref.load %arg3[%c15] : memref<98xf32, #tpu.memory_space<smem>>
      %c0_61 = arith.constant 0 : index
      %c33 = arith.constant 33 : index
      %146 = vector.load %arg7[%c0_61, %c33] : memref<2x358xf32, #tpu.memory_space<vmem>>, vector<1x256xf32>
      %147 = vector.broadcast %145 : f32 to vector<1x256xf32>
      %148 = arith.mulf %147, %146 : vector<1x256xf32>
      %149 = arith.addf %144, %148 : vector<1x256xf32>
      %c22 = arith.constant 22 : index
      %150 = memref.load %arg3[%c22] : memref<98xf32, #tpu.memory_space<smem>>
      %c0_62 = arith.constant 0 : index
      %c49_63 = arith.constant 49 : index
      %151 = vector.load %arg7[%c0_62, %c49_63] : memref<2x358xf32, #tpu.memory_space<vmem>>, vector<1x256xf32>
      %152 = vector.broadcast %150 : f32 to vector<1x256xf32>
      %153 = arith.mulf %152, %151 : vector<1x256xf32>
      %154 = arith.addf %149, %153 : vector<1x256xf32>
      %c29 = arith.constant 29 : index
      %155 = memref.load %arg3[%c29] : memref<98xf32, #tpu.memory_space<smem>>
      %c0_64 = arith.constant 0 : index
      %c65 = arith.constant 65 : index
      %156 = vector.load %arg7[%c0_64, %c65] : memref<2x358xf32, #tpu.memory_space<vmem>>, vector<1x256xf32>
      %157 = vector.broadcast %155 : f32 to vector<1x256xf32>
      %158 = arith.mulf %157, %156 : vector<1x256xf32>
      %159 = arith.addf %154, %158 : vector<1x256xf32>
      %c36 = arith.constant 36 : index
      %160 = memref.load %arg3[%c36] : memref<98xf32, #tpu.memory_space<smem>>
      %c0_65 = arith.constant 0 : index
      %c81 = arith.constant 81 : index
      %161 = vector.load %arg7[%c0_65, %c81] : memref<2x358xf32, #tpu.memory_space<vmem>>, vector<1x256xf32>
      %162 = vector.broadcast %160 : f32 to vector<1x256xf32>
      %163 = arith.mulf %162, %161 : vector<1x256xf32>
      %164 = arith.addf %159, %163 : vector<1x256xf32>
      %c43 = arith.constant 43 : index
      %165 = memref.load %arg3[%c43] : memref<98xf32, #tpu.memory_space<smem>>
      %c0_66 = arith.constant 0 : index
      %c97 = arith.constant 97 : index
      %166 = vector.load %arg7[%c0_66, %c97] : memref<2x358xf32, #tpu.memory_space<vmem>>, vector<1x256xf32>
      %167 = vector.broadcast %165 : f32 to vector<1x256xf32>
      %168 = arith.mulf %167, %166 : vector<1x256xf32>
      %169 = arith.addf %164, %168 : vector<1x256xf32>
      %c50 = arith.constant 50 : index
      %170 = memref.load %arg3[%c50] : memref<98xf32, #tpu.memory_space<smem>>
      %c1_67 = arith.constant 1 : index
      %c1_68 = arith.constant 1 : index
      %171 = vector.load %arg7[%c1_67, %c1_68] : memref<2x358xf32, #tpu.memory_space<vmem>>, vector<1x256xf32>
      %172 = vector.broadcast %170 : f32 to vector<1x256xf32>
      %173 = arith.mulf %172, %171 : vector<1x256xf32>
      %174 = arith.addf %169, %173 : vector<1x256xf32>
      %c57 = arith.constant 57 : index
      %175 = memref.load %arg3[%c57] : memref<98xf32, #tpu.memory_space<smem>>
      %c1_69 = arith.constant 1 : index
      %c17_70 = arith.constant 17 : index
      %176 = vector.load %arg7[%c1_69, %c17_70] : memref<2x358xf32, #tpu.memory_space<vmem>>, vector<1x256xf32>
      %177 = vector.broadcast %175 : f32 to vector<1x256xf32>
      %178 = arith.mulf %177, %176 : vector<1x256xf32>
      %179 = arith.addf %174, %178 : vector<1x256xf32>
      %c64_71 = arith.constant 64 : index
      %180 = memref.load %arg3[%c64_71] : memref<98xf32, #tpu.memory_space<smem>>
      %c1_72 = arith.constant 1 : index
      %c33_73 = arith.constant 33 : index
      %181 = vector.load %arg7[%c1_72, %c33_73] : memref<2x358xf32, #tpu.memory_space<vmem>>, vector<1x256xf32>
      %182 = vector.broadcast %180 : f32 to vector<1x256xf32>
      %183 = arith.mulf %182, %181 : vector<1x256xf32>
      %184 = arith.addf %179, %183 : vector<1x256xf32>
      %c71 = arith.constant 71 : index
      %185 = memref.load %arg3[%c71] : memref<98xf32, #tpu.memory_space<smem>>
      %c1_74 = arith.constant 1 : index
      %c49_75 = arith.constant 49 : index
      %186 = vector.load %arg7[%c1_74, %c49_75] : memref<2x358xf32, #tpu.memory_space<vmem>>, vector<1x256xf32>
      %187 = vector.broadcast %185 : f32 to vector<1x256xf32>
      %188 = arith.mulf %187, %186 : vector<1x256xf32>
      %189 = arith.addf %184, %188 : vector<1x256xf32>
      %c78 = arith.constant 78 : index
      %190 = memref.load %arg3[%c78] : memref<98xf32, #tpu.memory_space<smem>>
      %c1_76 = arith.constant 1 : index
      %c65_77 = arith.constant 65 : index
      %191 = vector.load %arg7[%c1_76, %c65_77] : memref<2x358xf32, #tpu.memory_space<vmem>>, vector<1x256xf32>
      %192 = vector.broadcast %190 : f32 to vector<1x256xf32>
      %193 = arith.mulf %192, %191 : vector<1x256xf32>
      %194 = arith.addf %189, %193 : vector<1x256xf32>
      %c85 = arith.constant 85 : index
      %195 = memref.load %arg3[%c85] : memref<98xf32, #tpu.memory_space<smem>>
      %c1_78 = arith.constant 1 : index
      %c81_79 = arith.constant 81 : index
      %196 = vector.load %arg7[%c1_78, %c81_79] : memref<2x358xf32, #tpu.memory_space<vmem>>, vector<1x256xf32>
      %197 = vector.broadcast %195 : f32 to vector<1x256xf32>
      %198 = arith.mulf %197, %196 : vector<1x256xf32>
      %199 = arith.addf %194, %198 : vector<1x256xf32>
      %c92 = arith.constant 92 : index
      %200 = memref.load %arg3[%c92] : memref<98xf32, #tpu.memory_space<smem>>
      %c1_80 = arith.constant 1 : index
      %c97_81 = arith.constant 97 : index
      %201 = vector.load %arg7[%c1_80, %c97_81] : memref<2x358xf32, #tpu.memory_space<vmem>>, vector<1x256xf32>
      %202 = vector.broadcast %200 : f32 to vector<1x256xf32>
      %203 = arith.mulf %202, %201 : vector<1x256xf32>
      %204 = arith.addf %199, %203 : vector<1x256xf32>
      %cst_82 = arith.constant 0.000000e+00 : f32
      %205 = vector.broadcast %cst_82 : f32 to vector<1x256xf32>
      %206 = arith.select %133, %204, %205 : vector<1x256xi1>, vector<1x256xf32>
      %207 = arith.addf %124, %206 : vector<1x256xf32>
      %c-1_i32 = arith.constant -1 : i32
      %208 = vector.broadcast %c-1_i32 : i32 to vector<1x256xi32>
      %209 = arith.addi %40, %208 : vector<1x256xi32>
      %c0_i32_83 = arith.constant 0 : i32
      %210 = vector.broadcast %c0_i32_83 : i32 to vector<1x256xi32>
      %211 = arith.cmpi sge, %209, %210 : vector<1x256xi32>
      %c-1_i32_84 = arith.constant -1 : i32
      %212 = vector.broadcast %c-1_i32_84 : i32 to vector<1x256xi32>
      %213 = arith.addi %40, %212 : vector<1x256xi32>
      %c16_i32_85 = arith.constant 16 : i32
      %214 = vector.broadcast %c16_i32_85 : i32 to vector<1x256xi32>
      %215 = arith.cmpi slt, %213, %214 : vector<1x256xi32>
      %216 = arith.andi %211, %215 : vector<1x256xi1>
      %cst_86 = arith.constant 0.000000e+00 : f32
      %217 = vector.broadcast %cst_86 : f32 to vector<1x256xf32>
      %c2 = arith.constant 2 : index
      %218 = memref.load %arg3[%c2] : memref<98xf32, #tpu.memory_space<smem>>
      %c0_87 = arith.constant 0 : index
      %c2_88 = arith.constant 2 : index
      %219 = vector.load %arg7[%c0_87, %c2_88] : memref<2x358xf32, #tpu.memory_space<vmem>>, vector<1x256xf32>
      %220 = vector.broadcast %218 : f32 to vector<1x256xf32>
      %221 = arith.mulf %220, %219 : vector<1x256xf32>
      %222 = arith.addf %217, %221 : vector<1x256xf32>
      %c9 = arith.constant 9 : index
      %223 = memref.load %arg3[%c9] : memref<98xf32, #tpu.memory_space<smem>>
      %c0_89 = arith.constant 0 : index
      %c18 = arith.constant 18 : index
      %224 = vector.load %arg7[%c0_89, %c18] : memref<2x358xf32, #tpu.memory_space<vmem>>, vector<1x256xf32>
      %225 = vector.broadcast %223 : f32 to vector<1x256xf32>
      %226 = arith.mulf %225, %224 : vector<1x256xf32>
      %227 = arith.addf %222, %226 : vector<1x256xf32>
      %c16_90 = arith.constant 16 : index
      %228 = memref.load %arg3[%c16_90] : memref<98xf32, #tpu.memory_space<smem>>
      %c0_91 = arith.constant 0 : index
      %c34 = arith.constant 34 : index
      %229 = vector.load %arg7[%c0_91, %c34] : memref<2x358xf32, #tpu.memory_space<vmem>>, vector<1x256xf32>
      %230 = vector.broadcast %228 : f32 to vector<1x256xf32>
      %231 = arith.mulf %230, %229 : vector<1x256xf32>
      %232 = arith.addf %227, %231 : vector<1x256xf32>
      %c23 = arith.constant 23 : index
      %233 = memref.load %arg3[%c23] : memref<98xf32, #tpu.memory_space<smem>>
      %c0_92 = arith.constant 0 : index
      %c50_93 = arith.constant 50 : index
      %234 = vector.load %arg7[%c0_92, %c50_93] : memref<2x358xf32, #tpu.memory_space<vmem>>, vector<1x256xf32>
      %235 = vector.broadcast %233 : f32 to vector<1x256xf32>
      %236 = arith.mulf %235, %234 : vector<1x256xf32>
      %237 = arith.addf %232, %236 : vector<1x256xf32>
      %c30 = arith.constant 30 : index
      %238 = memref.load %arg3[%c30] : memref<98xf32, #tpu.memory_space<smem>>
      %c0_94 = arith.constant 0 : index
      %c66 = arith.constant 66 : index
      %239 = vector.load %arg7[%c0_94, %c66] : memref<2x358xf32, #tpu.memory_space<vmem>>, vector<1x256xf32>
      %240 = vector.broadcast %238 : f32 to vector<1x256xf32>
      %241 = arith.mulf %240, %239 : vector<1x256xf32>
      %242 = arith.addf %237, %241 : vector<1x256xf32>
      %c37 = arith.constant 37 : index
      %243 = memref.load %arg3[%c37] : memref<98xf32, #tpu.memory_space<smem>>
      %c0_95 = arith.constant 0 : index
      %c82 = arith.constant 82 : index
      %244 = vector.load %arg7[%c0_95, %c82] : memref<2x358xf32, #tpu.memory_space<vmem>>, vector<1x256xf32>
      %245 = vector.broadcast %243 : f32 to vector<1x256xf32>
      %246 = arith.mulf %245, %244 : vector<1x256xf32>
      %247 = arith.addf %242, %246 : vector<1x256xf32>
      %c44 = arith.constant 44 : index
      %248 = memref.load %arg3[%c44] : memref<98xf32, #tpu.memory_space<smem>>
      %c0_96 = arith.constant 0 : index
      %c98 = arith.constant 98 : index
      %249 = vector.load %arg7[%c0_96, %c98] : memref<2x358xf32, #tpu.memory_space<vmem>>, vector<1x256xf32>
      %250 = vector.broadcast %248 : f32 to vector<1x256xf32>
      %251 = arith.mulf %250, %249 : vector<1x256xf32>
      %252 = arith.addf %247, %251 : vector<1x256xf32>
      %c51_97 = arith.constant 51 : index
      %253 = memref.load %arg3[%c51_97] : memref<98xf32, #tpu.memory_space<smem>>
      %c1_98 = arith.constant 1 : index
      %c2_99 = arith.constant 2 : index
      %254 = vector.load %arg7[%c1_98, %c2_99] : memref<2x358xf32, #tpu.memory_space<vmem>>, vector<1x256xf32>
      %255 = vector.broadcast %253 : f32 to vector<1x256xf32>
      %256 = arith.mulf %255, %254 : vector<1x256xf32>
      %257 = arith.addf %252, %256 : vector<1x256xf32>
      %c58 = arith.constant 58 : index
      %258 = memref.load %arg3[%c58] : memref<98xf32, #tpu.memory_space<smem>>
      %c1_100 = arith.constant 1 : index
      %c18_101 = arith.constant 18 : index
      %259 = vector.load %arg7[%c1_100, %c18_101] : memref<2x358xf32, #tpu.memory_space<vmem>>, vector<1x256xf32>
      %260 = vector.broadcast %258 : f32 to vector<1x256xf32>
      %261 = arith.mulf %260, %259 : vector<1x256xf32>
      %262 = arith.addf %257, %261 : vector<1x256xf32>
      %c65_102 = arith.constant 65 : index
      %263 = memref.load %arg3[%c65_102] : memref<98xf32, #tpu.memory_space<smem>>
      %c1_103 = arith.constant 1 : index
      %c34_104 = arith.constant 34 : index
      %264 = vector.load %arg7[%c1_103, %c34_104] : memref<2x358xf32, #tpu.memory_space<vmem>>, vector<1x256xf32>
      %265 = vector.broadcast %263 : f32 to vector<1x256xf32>
      %266 = arith.mulf %265, %264 : vector<1x256xf32>
      %267 = arith.addf %262, %266 : vector<1x256xf32>
      %c72 = arith.constant 72 : index
      %268 = memref.load %arg3[%c72] : memref<98xf32, #tpu.memory_space<smem>>
      %c1_105 = arith.constant 1 : index
      %c50_106 = arith.constant 50 : index
      %269 = vector.load %arg7[%c1_105, %c50_106] : memref<2x358xf32, #tpu.memory_space<vmem>>, vector<1x256xf32>
      %270 = vector.broadcast %268 : f32 to vector<1x256xf32>
      %271 = arith.mulf %270, %269 : vector<1x256xf32>
      %272 = arith.addf %267, %271 : vector<1x256xf32>
      %c79 = arith.constant 79 : index
      %273 = memref.load %arg3[%c79] : memref<98xf32, #tpu.memory_space<smem>>
      %c1_107 = arith.constant 1 : index
      %c66_108 = arith.constant 66 : index
      %274 = vector.load %arg7[%c1_107, %c66_108] : memref<2x358xf32, #tpu.memory_space<vmem>>, vector<1x256xf32>
      %275 = vector.broadcast %273 : f32 to vector<1x256xf32>
      %276 = arith.mulf %275, %274 : vector<1x256xf32>
      %277 = arith.addf %272, %276 : vector<1x256xf32>
      %c86 = arith.constant 86 : index
      %278 = memref.load %arg3[%c86] : memref<98xf32, #tpu.memory_space<smem>>
      %c1_109 = arith.constant 1 : index
      %c82_110 = arith.constant 82 : index
      %279 = vector.load %arg7[%c1_109, %c82_110] : memref<2x358xf32, #tpu.memory_space<vmem>>, vector<1x256xf32>
      %280 = vector.broadcast %278 : f32 to vector<1x256xf32>
      %281 = arith.mulf %280, %279 : vector<1x256xf32>
      %282 = arith.addf %277, %281 : vector<1x256xf32>
      %c93 = arith.constant 93 : index
      %283 = memref.load %arg3[%c93] : memref<98xf32, #tpu.memory_space<smem>>
      %c1_111 = arith.constant 1 : index
      %c98_112 = arith.constant 98 : index
      %284 = vector.load %arg7[%c1_111, %c98_112] : memref<2x358xf32, #tpu.memory_space<vmem>>, vector<1x256xf32>
      %285 = vector.broadcast %283 : f32 to vector<1x256xf32>
      %286 = arith.mulf %285, %284 : vector<1x256xf32>
      %287 = arith.addf %282, %286 : vector<1x256xf32>
      %cst_113 = arith.constant 0.000000e+00 : f32
      %288 = vector.broadcast %cst_113 : f32 to vector<1x256xf32>
      %289 = arith.select %216, %287, %288 : vector<1x256xi1>, vector<1x256xf32>
      %290 = arith.addf %207, %289 : vector<1x256xf32>
      %c0_i32_114 = arith.constant 0 : i32
      %291 = vector.broadcast %c0_i32_114 : i32 to vector<1x256xi32>
      %292 = arith.addi %40, %291 : vector<1x256xi32>
      %c0_i32_115 = arith.constant 0 : i32
      %293 = vector.broadcast %c0_i32_115 : i32 to vector<1x256xi32>
      %294 = arith.cmpi sge, %292, %293 : vector<1x256xi32>
      %c0_i32_116 = arith.constant 0 : i32
      %295 = vector.broadcast %c0_i32_116 : i32 to vector<1x256xi32>
      %296 = arith.addi %40, %295 : vector<1x256xi32>
      %c16_i32_117 = arith.constant 16 : i32
      %297 = vector.broadcast %c16_i32_117 : i32 to vector<1x256xi32>
      %298 = arith.cmpi slt, %296, %297 : vector<1x256xi32>
      %299 = arith.andi %294, %298 : vector<1x256xi1>
      %cst_118 = arith.constant 0.000000e+00 : f32
      %300 = vector.broadcast %cst_118 : f32 to vector<1x256xf32>
      %c3 = arith.constant 3 : index
      %301 = memref.load %arg3[%c3] : memref<98xf32, #tpu.memory_space<smem>>
      %c0_119 = arith.constant 0 : index
      %c3_120 = arith.constant 3 : index
      %302 = vector.load %arg7[%c0_119, %c3_120] : memref<2x358xf32, #tpu.memory_space<vmem>>, vector<1x256xf32>
      %303 = vector.broadcast %301 : f32 to vector<1x256xf32>
      %304 = arith.mulf %303, %302 : vector<1x256xf32>
      %305 = arith.addf %300, %304 : vector<1x256xf32>
      %c10 = arith.constant 10 : index
      %306 = memref.load %arg3[%c10] : memref<98xf32, #tpu.memory_space<smem>>
      %c0_121 = arith.constant 0 : index
      %c19 = arith.constant 19 : index
      %307 = vector.load %arg7[%c0_121, %c19] : memref<2x358xf32, #tpu.memory_space<vmem>>, vector<1x256xf32>
      %308 = vector.broadcast %306 : f32 to vector<1x256xf32>
      %309 = arith.mulf %308, %307 : vector<1x256xf32>
      %310 = arith.addf %305, %309 : vector<1x256xf32>
      %c17_122 = arith.constant 17 : index
      %311 = memref.load %arg3[%c17_122] : memref<98xf32, #tpu.memory_space<smem>>
      %c0_123 = arith.constant 0 : index
      %c35_124 = arith.constant 35 : index
      %312 = vector.load %arg7[%c0_123, %c35_124] : memref<2x358xf32, #tpu.memory_space<vmem>>, vector<1x256xf32>
      %313 = vector.broadcast %311 : f32 to vector<1x256xf32>
      %314 = arith.mulf %313, %312 : vector<1x256xf32>
      %315 = arith.addf %310, %314 : vector<1x256xf32>
      %c24 = arith.constant 24 : index
      %316 = memref.load %arg3[%c24] : memref<98xf32, #tpu.memory_space<smem>>
      %c0_125 = arith.constant 0 : index
      %c51_126 = arith.constant 51 : index
      %317 = vector.load %arg7[%c0_125, %c51_126] : memref<2x358xf32, #tpu.memory_space<vmem>>, vector<1x256xf32>
      %318 = vector.broadcast %316 : f32 to vector<1x256xf32>
      %319 = arith.mulf %318, %317 : vector<1x256xf32>
      %320 = arith.addf %315, %319 : vector<1x256xf32>
      %c31 = arith.constant 31 : index
      %321 = memref.load %arg3[%c31] : memref<98xf32, #tpu.memory_space<smem>>
      %c0_127 = arith.constant 0 : index
      %c67 = arith.constant 67 : index
      %322 = vector.load %arg7[%c0_127, %c67] : memref<2x358xf32, #tpu.memory_space<vmem>>, vector<1x256xf32>
      %323 = vector.broadcast %321 : f32 to vector<1x256xf32>
      %324 = arith.mulf %323, %322 : vector<1x256xf32>
      %325 = arith.addf %320, %324 : vector<1x256xf32>
      %c38 = arith.constant 38 : index
      %326 = memref.load %arg3[%c38] : memref<98xf32, #tpu.memory_space<smem>>
      %c0_128 = arith.constant 0 : index
      %c83 = arith.constant 83 : index
      %327 = vector.load %arg7[%c0_128, %c83] : memref<2x358xf32, #tpu.memory_space<vmem>>, vector<1x256xf32>
      %328 = vector.broadcast %326 : f32 to vector<1x256xf32>
      %329 = arith.mulf %328, %327 : vector<1x256xf32>
      %330 = arith.addf %325, %329 : vector<1x256xf32>
      %c45 = arith.constant 45 : index
      %331 = memref.load %arg3[%c45] : memref<98xf32, #tpu.memory_space<smem>>
      %c0_129 = arith.constant 0 : index
      %c99 = arith.constant 99 : index
      %332 = vector.load %arg7[%c0_129, %c99] : memref<2x358xf32, #tpu.memory_space<vmem>>, vector<1x256xf32>
      %333 = vector.broadcast %331 : f32 to vector<1x256xf32>
      %334 = arith.mulf %333, %332 : vector<1x256xf32>
      %335 = arith.addf %330, %334 : vector<1x256xf32>
      %c52 = arith.constant 52 : index
      %336 = memref.load %arg3[%c52] : memref<98xf32, #tpu.memory_space<smem>>
      %c1_130 = arith.constant 1 : index
      %c3_131 = arith.constant 3 : index
      %337 = vector.load %arg7[%c1_130, %c3_131] : memref<2x358xf32, #tpu.memory_space<vmem>>, vector<1x256xf32>
      %338 = vector.broadcast %336 : f32 to vector<1x256xf32>
      %339 = arith.mulf %338, %337 : vector<1x256xf32>
      %340 = arith.addf %335, %339 : vector<1x256xf32>
      %c59 = arith.constant 59 : index
      %341 = memref.load %arg3[%c59] : memref<98xf32, #tpu.memory_space<smem>>
      %c1_132 = arith.constant 1 : index
      %c19_133 = arith.constant 19 : index
      %342 = vector.load %arg7[%c1_132, %c19_133] : memref<2x358xf32, #tpu.memory_space<vmem>>, vector<1x256xf32>
      %343 = vector.broadcast %341 : f32 to vector<1x256xf32>
      %344 = arith.mulf %343, %342 : vector<1x256xf32>
      %345 = arith.addf %340, %344 : vector<1x256xf32>
      %c66_134 = arith.constant 66 : index
      %346 = memref.load %arg3[%c66_134] : memref<98xf32, #tpu.memory_space<smem>>
      %c1_135 = arith.constant 1 : index
      %c35_136 = arith.constant 35 : index
      %347 = vector.load %arg7[%c1_135, %c35_136] : memref<2x358xf32, #tpu.memory_space<vmem>>, vector<1x256xf32>
      %348 = vector.broadcast %346 : f32 to vector<1x256xf32>
      %349 = arith.mulf %348, %347 : vector<1x256xf32>
      %350 = arith.addf %345, %349 : vector<1x256xf32>
      %c73 = arith.constant 73 : index
      %351 = memref.load %arg3[%c73] : memref<98xf32, #tpu.memory_space<smem>>
      %c1_137 = arith.constant 1 : index
      %c51_138 = arith.constant 51 : index
      %352 = vector.load %arg7[%c1_137, %c51_138] : memref<2x358xf32, #tpu.memory_space<vmem>>, vector<1x256xf32>
      %353 = vector.broadcast %351 : f32 to vector<1x256xf32>
      %354 = arith.mulf %353, %352 : vector<1x256xf32>
      %355 = arith.addf %350, %354 : vector<1x256xf32>
      %c80_139 = arith.constant 80 : index
      %356 = memref.load %arg3[%c80_139] : memref<98xf32, #tpu.memory_space<smem>>
      %c1_140 = arith.constant 1 : index
      %c67_141 = arith.constant 67 : index
      %357 = vector.load %arg7[%c1_140, %c67_141] : memref<2x358xf32, #tpu.memory_space<vmem>>, vector<1x256xf32>
      %358 = vector.broadcast %356 : f32 to vector<1x256xf32>
      %359 = arith.mulf %358, %357 : vector<1x256xf32>
      %360 = arith.addf %355, %359 : vector<1x256xf32>
      %c87 = arith.constant 87 : index
      %361 = memref.load %arg3[%c87] : memref<98xf32, #tpu.memory_space<smem>>
      %c1_142 = arith.constant 1 : index
      %c83_143 = arith.constant 83 : index
      %362 = vector.load %arg7[%c1_142, %c83_143] : memref<2x358xf32, #tpu.memory_space<vmem>>, vector<1x256xf32>
      %363 = vector.broadcast %361 : f32 to vector<1x256xf32>
      %364 = arith.mulf %363, %362 : vector<1x256xf32>
      %365 = arith.addf %360, %364 : vector<1x256xf32>
      %c94 = arith.constant 94 : index
      %366 = memref.load %arg3[%c94] : memref<98xf32, #tpu.memory_space<smem>>
      %c1_144 = arith.constant 1 : index
      %c99_145 = arith.constant 99 : index
      %367 = vector.load %arg7[%c1_144, %c99_145] : memref<2x358xf32, #tpu.memory_space<vmem>>, vector<1x256xf32>
      %368 = vector.broadcast %366 : f32 to vector<1x256xf32>
      %369 = arith.mulf %368, %367 : vector<1x256xf32>
      %370 = arith.addf %365, %369 : vector<1x256xf32>
      %cst_146 = arith.constant 0.000000e+00 : f32
      %371 = vector.broadcast %cst_146 : f32 to vector<1x256xf32>
      %372 = arith.select %299, %370, %371 : vector<1x256xi1>, vector<1x256xf32>
      %373 = arith.addf %290, %372 : vector<1x256xf32>
      %c1_i32_147 = arith.constant 1 : i32
      %374 = vector.broadcast %c1_i32_147 : i32 to vector<1x256xi32>
      %375 = arith.addi %40, %374 : vector<1x256xi32>
      %c0_i32_148 = arith.constant 0 : i32
      %376 = vector.broadcast %c0_i32_148 : i32 to vector<1x256xi32>
      %377 = arith.cmpi sge, %375, %376 : vector<1x256xi32>
      %c1_i32_149 = arith.constant 1 : i32
      %378 = vector.broadcast %c1_i32_149 : i32 to vector<1x256xi32>
      %379 = arith.addi %40, %378 : vector<1x256xi32>
      %c16_i32_150 = arith.constant 16 : i32
      %380 = vector.broadcast %c16_i32_150 : i32 to vector<1x256xi32>
      %381 = arith.cmpi slt, %379, %380 : vector<1x256xi32>
      %382 = arith.andi %377, %381 : vector<1x256xi1>
      %cst_151 = arith.constant 0.000000e+00 : f32
      %383 = vector.broadcast %cst_151 : f32 to vector<1x256xf32>
      %c4 = arith.constant 4 : index
      %384 = memref.load %arg3[%c4] : memref<98xf32, #tpu.memory_space<smem>>
      %c0_152 = arith.constant 0 : index
      %c4_153 = arith.constant 4 : index
      %385 = vector.load %arg7[%c0_152, %c4_153] : memref<2x358xf32, #tpu.memory_space<vmem>>, vector<1x256xf32>
      %386 = vector.broadcast %384 : f32 to vector<1x256xf32>
      %387 = arith.mulf %386, %385 : vector<1x256xf32>
      %388 = arith.addf %383, %387 : vector<1x256xf32>
      %c11 = arith.constant 11 : index
      %389 = memref.load %arg3[%c11] : memref<98xf32, #tpu.memory_space<smem>>
      %c0_154 = arith.constant 0 : index
      %c20 = arith.constant 20 : index
      %390 = vector.load %arg7[%c0_154, %c20] : memref<2x358xf32, #tpu.memory_space<vmem>>, vector<1x256xf32>
      %391 = vector.broadcast %389 : f32 to vector<1x256xf32>
      %392 = arith.mulf %391, %390 : vector<1x256xf32>
      %393 = arith.addf %388, %392 : vector<1x256xf32>
      %c18_155 = arith.constant 18 : index
      %394 = memref.load %arg3[%c18_155] : memref<98xf32, #tpu.memory_space<smem>>
      %c0_156 = arith.constant 0 : index
      %c36_157 = arith.constant 36 : index
      %395 = vector.load %arg7[%c0_156, %c36_157] : memref<2x358xf32, #tpu.memory_space<vmem>>, vector<1x256xf32>
      %396 = vector.broadcast %394 : f32 to vector<1x256xf32>
      %397 = arith.mulf %396, %395 : vector<1x256xf32>
      %398 = arith.addf %393, %397 : vector<1x256xf32>
      %c25 = arith.constant 25 : index
      %399 = memref.load %arg3[%c25] : memref<98xf32, #tpu.memory_space<smem>>
      %c0_158 = arith.constant 0 : index
      %c52_159 = arith.constant 52 : index
      %400 = vector.load %arg7[%c0_158, %c52_159] : memref<2x358xf32, #tpu.memory_space<vmem>>, vector<1x256xf32>
      %401 = vector.broadcast %399 : f32 to vector<1x256xf32>
      %402 = arith.mulf %401, %400 : vector<1x256xf32>
      %403 = arith.addf %398, %402 : vector<1x256xf32>
      %c32_160 = arith.constant 32 : index
      %404 = memref.load %arg3[%c32_160] : memref<98xf32, #tpu.memory_space<smem>>
      %c0_161 = arith.constant 0 : index
      %c68 = arith.constant 68 : index
      %405 = vector.load %arg7[%c0_161, %c68] : memref<2x358xf32, #tpu.memory_space<vmem>>, vector<1x256xf32>
      %406 = vector.broadcast %404 : f32 to vector<1x256xf32>
      %407 = arith.mulf %406, %405 : vector<1x256xf32>
      %408 = arith.addf %403, %407 : vector<1x256xf32>
      %c39 = arith.constant 39 : index
      %409 = memref.load %arg3[%c39] : memref<98xf32, #tpu.memory_space<smem>>
      %c0_162 = arith.constant 0 : index
      %c84_163 = arith.constant 84 : index
      %410 = vector.load %arg7[%c0_162, %c84_163] : memref<2x358xf32, #tpu.memory_space<vmem>>, vector<1x256xf32>
      %411 = vector.broadcast %409 : f32 to vector<1x256xf32>
      %412 = arith.mulf %411, %410 : vector<1x256xf32>
      %413 = arith.addf %408, %412 : vector<1x256xf32>
      %c46 = arith.constant 46 : index
      %414 = memref.load %arg3[%c46] : memref<98xf32, #tpu.memory_space<smem>>
      %c0_164 = arith.constant 0 : index
      %c100 = arith.constant 100 : index
      %415 = vector.load %arg7[%c0_164, %c100] : memref<2x358xf32, #tpu.memory_space<vmem>>, vector<1x256xf32>
      %416 = vector.broadcast %414 : f32 to vector<1x256xf32>
      %417 = arith.mulf %416, %415 : vector<1x256xf32>
      %418 = arith.addf %413, %417 : vector<1x256xf32>
      %c53 = arith.constant 53 : index
      %419 = memref.load %arg3[%c53] : memref<98xf32, #tpu.memory_space<smem>>
      %c1_165 = arith.constant 1 : index
      %c4_166 = arith.constant 4 : index
      %420 = vector.load %arg7[%c1_165, %c4_166] : memref<2x358xf32, #tpu.memory_space<vmem>>, vector<1x256xf32>
      %421 = vector.broadcast %419 : f32 to vector<1x256xf32>
      %422 = arith.mulf %421, %420 : vector<1x256xf32>
      %423 = arith.addf %418, %422 : vector<1x256xf32>
      %c60 = arith.constant 60 : index
      %424 = memref.load %arg3[%c60] : memref<98xf32, #tpu.memory_space<smem>>
      %c1_167 = arith.constant 1 : index
      %c20_168 = arith.constant 20 : index
      %425 = vector.load %arg7[%c1_167, %c20_168] : memref<2x358xf32, #tpu.memory_space<vmem>>, vector<1x256xf32>
      %426 = vector.broadcast %424 : f32 to vector<1x256xf32>
      %427 = arith.mulf %426, %425 : vector<1x256xf32>
      %428 = arith.addf %423, %427 : vector<1x256xf32>
      %c67_169 = arith.constant 67 : index
      %429 = memref.load %arg3[%c67_169] : memref<98xf32, #tpu.memory_space<smem>>
      %c1_170 = arith.constant 1 : index
      %c36_171 = arith.constant 36 : index
      %430 = vector.load %arg7[%c1_170, %c36_171] : memref<2x358xf32, #tpu.memory_space<vmem>>, vector<1x256xf32>
      %431 = vector.broadcast %429 : f32 to vector<1x256xf32>
      %432 = arith.mulf %431, %430 : vector<1x256xf32>
      %433 = arith.addf %428, %432 : vector<1x256xf32>
      %c74 = arith.constant 74 : index
      %434 = memref.load %arg3[%c74] : memref<98xf32, #tpu.memory_space<smem>>
      %c1_172 = arith.constant 1 : index
      %c52_173 = arith.constant 52 : index
      %435 = vector.load %arg7[%c1_172, %c52_173] : memref<2x358xf32, #tpu.memory_space<vmem>>, vector<1x256xf32>
      %436 = vector.broadcast %434 : f32 to vector<1x256xf32>
      %437 = arith.mulf %436, %435 : vector<1x256xf32>
      %438 = arith.addf %433, %437 : vector<1x256xf32>
      %c81_174 = arith.constant 81 : index
      %439 = memref.load %arg3[%c81_174] : memref<98xf32, #tpu.memory_space<smem>>
      %c1_175 = arith.constant 1 : index
      %c68_176 = arith.constant 68 : index
      %440 = vector.load %arg7[%c1_175, %c68_176] : memref<2x358xf32, #tpu.memory_space<vmem>>, vector<1x256xf32>
      %441 = vector.broadcast %439 : f32 to vector<1x256xf32>
      %442 = arith.mulf %441, %440 : vector<1x256xf32>
      %443 = arith.addf %438, %442 : vector<1x256xf32>
      %c88 = arith.constant 88 : index
      %444 = memref.load %arg3[%c88] : memref<98xf32, #tpu.memory_space<smem>>
      %c1_177 = arith.constant 1 : index
      %c84_178 = arith.constant 84 : index
      %445 = vector.load %arg7[%c1_177, %c84_178] : memref<2x358xf32, #tpu.memory_space<vmem>>, vector<1x256xf32>
      %446 = vector.broadcast %444 : f32 to vector<1x256xf32>
      %447 = arith.mulf %446, %445 : vector<1x256xf32>
      %448 = arith.addf %443, %447 : vector<1x256xf32>
      %c95 = arith.constant 95 : index
      %449 = memref.load %arg3[%c95] : memref<98xf32, #tpu.memory_space<smem>>
      %c1_179 = arith.constant 1 : index
      %c100_180 = arith.constant 100 : index
      %450 = vector.load %arg7[%c1_179, %c100_180] : memref<2x358xf32, #tpu.memory_space<vmem>>, vector<1x256xf32>
      %451 = vector.broadcast %449 : f32 to vector<1x256xf32>
      %452 = arith.mulf %451, %450 : vector<1x256xf32>
      %453 = arith.addf %448, %452 : vector<1x256xf32>
      %cst_181 = arith.constant 0.000000e+00 : f32
      %454 = vector.broadcast %cst_181 : f32 to vector<1x256xf32>
      %455 = arith.select %382, %453, %454 : vector<1x256xi1>, vector<1x256xf32>
      %456 = arith.addf %373, %455 : vector<1x256xf32>
      %c2_i32 = arith.constant 2 : i32
      %457 = vector.broadcast %c2_i32 : i32 to vector<1x256xi32>
      %458 = arith.addi %40, %457 : vector<1x256xi32>
      %c0_i32_182 = arith.constant 0 : i32
      %459 = vector.broadcast %c0_i32_182 : i32 to vector<1x256xi32>
      %460 = arith.cmpi sge, %458, %459 : vector<1x256xi32>
      %c2_i32_183 = arith.constant 2 : i32
      %461 = vector.broadcast %c2_i32_183 : i32 to vector<1x256xi32>
      %462 = arith.addi %40, %461 : vector<1x256xi32>
      %c16_i32_184 = arith.constant 16 : i32
      %463 = vector.broadcast %c16_i32_184 : i32 to vector<1x256xi32>
      %464 = arith.cmpi slt, %462, %463 : vector<1x256xi32>
      %465 = arith.andi %460, %464 : vector<1x256xi1>
      %cst_185 = arith.constant 0.000000e+00 : f32
      %466 = vector.broadcast %cst_185 : f32 to vector<1x256xf32>
      %c5 = arith.constant 5 : index
      %467 = memref.load %arg3[%c5] : memref<98xf32, #tpu.memory_space<smem>>
      %c0_186 = arith.constant 0 : index
      %c5_187 = arith.constant 5 : index
      %468 = vector.load %arg7[%c0_186, %c5_187] : memref<2x358xf32, #tpu.memory_space<vmem>>, vector<1x256xf32>
      %469 = vector.broadcast %467 : f32 to vector<1x256xf32>
      %470 = arith.mulf %469, %468 : vector<1x256xf32>
      %471 = arith.addf %466, %470 : vector<1x256xf32>
      %c12 = arith.constant 12 : index
      %472 = memref.load %arg3[%c12] : memref<98xf32, #tpu.memory_space<smem>>
      %c0_188 = arith.constant 0 : index
      %c21_189 = arith.constant 21 : index
      %473 = vector.load %arg7[%c0_188, %c21_189] : memref<2x358xf32, #tpu.memory_space<vmem>>, vector<1x256xf32>
      %474 = vector.broadcast %472 : f32 to vector<1x256xf32>
      %475 = arith.mulf %474, %473 : vector<1x256xf32>
      %476 = arith.addf %471, %475 : vector<1x256xf32>
      %c19_190 = arith.constant 19 : index
      %477 = memref.load %arg3[%c19_190] : memref<98xf32, #tpu.memory_space<smem>>
      %c0_191 = arith.constant 0 : index
      %c37_192 = arith.constant 37 : index
      %478 = vector.load %arg7[%c0_191, %c37_192] : memref<2x358xf32, #tpu.memory_space<vmem>>, vector<1x256xf32>
      %479 = vector.broadcast %477 : f32 to vector<1x256xf32>
      %480 = arith.mulf %479, %478 : vector<1x256xf32>
      %481 = arith.addf %476, %480 : vector<1x256xf32>
      %c26 = arith.constant 26 : index
      %482 = memref.load %arg3[%c26] : memref<98xf32, #tpu.memory_space<smem>>
      %c0_193 = arith.constant 0 : index
      %c53_194 = arith.constant 53 : index
      %483 = vector.load %arg7[%c0_193, %c53_194] : memref<2x358xf32, #tpu.memory_space<vmem>>, vector<1x256xf32>
      %484 = vector.broadcast %482 : f32 to vector<1x256xf32>
      %485 = arith.mulf %484, %483 : vector<1x256xf32>
      %486 = arith.addf %481, %485 : vector<1x256xf32>
      %c33_195 = arith.constant 33 : index
      %487 = memref.load %arg3[%c33_195] : memref<98xf32, #tpu.memory_space<smem>>
      %c0_196 = arith.constant 0 : index
      %c69 = arith.constant 69 : index
      %488 = vector.load %arg7[%c0_196, %c69] : memref<2x358xf32, #tpu.memory_space<vmem>>, vector<1x256xf32>
      %489 = vector.broadcast %487 : f32 to vector<1x256xf32>
      %490 = arith.mulf %489, %488 : vector<1x256xf32>
      %491 = arith.addf %486, %490 : vector<1x256xf32>
      %c40 = arith.constant 40 : index
      %492 = memref.load %arg3[%c40] : memref<98xf32, #tpu.memory_space<smem>>
      %c0_197 = arith.constant 0 : index
      %c85_198 = arith.constant 85 : index
      %493 = vector.load %arg7[%c0_197, %c85_198] : memref<2x358xf32, #tpu.memory_space<vmem>>, vector<1x256xf32>
      %494 = vector.broadcast %492 : f32 to vector<1x256xf32>
      %495 = arith.mulf %494, %493 : vector<1x256xf32>
      %496 = arith.addf %491, %495 : vector<1x256xf32>
      %c47 = arith.constant 47 : index
      %497 = memref.load %arg3[%c47] : memref<98xf32, #tpu.memory_space<smem>>
      %c0_199 = arith.constant 0 : index
      %c101 = arith.constant 101 : index
      %498 = vector.load %arg7[%c0_199, %c101] : memref<2x358xf32, #tpu.memory_space<vmem>>, vector<1x256xf32>
      %499 = vector.broadcast %497 : f32 to vector<1x256xf32>
      %500 = arith.mulf %499, %498 : vector<1x256xf32>
      %501 = arith.addf %496, %500 : vector<1x256xf32>
      %c54 = arith.constant 54 : index
      %502 = memref.load %arg3[%c54] : memref<98xf32, #tpu.memory_space<smem>>
      %c1_200 = arith.constant 1 : index
      %c5_201 = arith.constant 5 : index
      %503 = vector.load %arg7[%c1_200, %c5_201] : memref<2x358xf32, #tpu.memory_space<vmem>>, vector<1x256xf32>
      %504 = vector.broadcast %502 : f32 to vector<1x256xf32>
      %505 = arith.mulf %504, %503 : vector<1x256xf32>
      %506 = arith.addf %501, %505 : vector<1x256xf32>
      %c61 = arith.constant 61 : index
      %507 = memref.load %arg3[%c61] : memref<98xf32, #tpu.memory_space<smem>>
      %c1_202 = arith.constant 1 : index
      %c21_203 = arith.constant 21 : index
      %508 = vector.load %arg7[%c1_202, %c21_203] : memref<2x358xf32, #tpu.memory_space<vmem>>, vector<1x256xf32>
      %509 = vector.broadcast %507 : f32 to vector<1x256xf32>
      %510 = arith.mulf %509, %508 : vector<1x256xf32>
      %511 = arith.addf %506, %510 : vector<1x256xf32>
      %c68_204 = arith.constant 68 : index
      %512 = memref.load %arg3[%c68_204] : memref<98xf32, #tpu.memory_space<smem>>
      %c1_205 = arith.constant 1 : index
      %c37_206 = arith.constant 37 : index
      %513 = vector.load %arg7[%c1_205, %c37_206] : memref<2x358xf32, #tpu.memory_space<vmem>>, vector<1x256xf32>
      %514 = vector.broadcast %512 : f32 to vector<1x256xf32>
      %515 = arith.mulf %514, %513 : vector<1x256xf32>
      %516 = arith.addf %511, %515 : vector<1x256xf32>
      %c75 = arith.constant 75 : index
      %517 = memref.load %arg3[%c75] : memref<98xf32, #tpu.memory_space<smem>>
      %c1_207 = arith.constant 1 : index
      %c53_208 = arith.constant 53 : index
      %518 = vector.load %arg7[%c1_207, %c53_208] : memref<2x358xf32, #tpu.memory_space<vmem>>, vector<1x256xf32>
      %519 = vector.broadcast %517 : f32 to vector<1x256xf32>
      %520 = arith.mulf %519, %518 : vector<1x256xf32>
      %521 = arith.addf %516, %520 : vector<1x256xf32>
      %c82_209 = arith.constant 82 : index
      %522 = memref.load %arg3[%c82_209] : memref<98xf32, #tpu.memory_space<smem>>
      %c1_210 = arith.constant 1 : index
      %c69_211 = arith.constant 69 : index
      %523 = vector.load %arg7[%c1_210, %c69_211] : memref<2x358xf32, #tpu.memory_space<vmem>>, vector<1x256xf32>
      %524 = vector.broadcast %522 : f32 to vector<1x256xf32>
      %525 = arith.mulf %524, %523 : vector<1x256xf32>
      %526 = arith.addf %521, %525 : vector<1x256xf32>
      %c89 = arith.constant 89 : index
      %527 = memref.load %arg3[%c89] : memref<98xf32, #tpu.memory_space<smem>>
      %c1_212 = arith.constant 1 : index
      %c85_213 = arith.constant 85 : index
      %528 = vector.load %arg7[%c1_212, %c85_213] : memref<2x358xf32, #tpu.memory_space<vmem>>, vector<1x256xf32>
      %529 = vector.broadcast %527 : f32 to vector<1x256xf32>
      %530 = arith.mulf %529, %528 : vector<1x256xf32>
      %531 = arith.addf %526, %530 : vector<1x256xf32>
      %c96_214 = arith.constant 96 : index
      %532 = memref.load %arg3[%c96_214] : memref<98xf32, #tpu.memory_space<smem>>
      %c1_215 = arith.constant 1 : index
      %c101_216 = arith.constant 101 : index
      %533 = vector.load %arg7[%c1_215, %c101_216] : memref<2x358xf32, #tpu.memory_space<vmem>>, vector<1x256xf32>
      %534 = vector.broadcast %532 : f32 to vector<1x256xf32>
      %535 = arith.mulf %534, %533 : vector<1x256xf32>
      %536 = arith.addf %531, %535 : vector<1x256xf32>
      %cst_217 = arith.constant 0.000000e+00 : f32
      %537 = vector.broadcast %cst_217 : f32 to vector<1x256xf32>
      %538 = arith.select %465, %536, %537 : vector<1x256xi1>, vector<1x256xf32>
      %539 = arith.addf %456, %538 : vector<1x256xf32>
      %c3_i32 = arith.constant 3 : i32
      %540 = vector.broadcast %c3_i32 : i32 to vector<1x256xi32>
      %541 = arith.addi %40, %540 : vector<1x256xi32>
      %c0_i32_218 = arith.constant 0 : i32
      %542 = vector.broadcast %c0_i32_218 : i32 to vector<1x256xi32>
      %543 = arith.cmpi sge, %541, %542 : vector<1x256xi32>
      %c3_i32_219 = arith.constant 3 : i32
      %544 = vector.broadcast %c3_i32_219 : i32 to vector<1x256xi32>
      %545 = arith.addi %40, %544 : vector<1x256xi32>
      %c16_i32_220 = arith.constant 16 : i32
      %546 = vector.broadcast %c16_i32_220 : i32 to vector<1x256xi32>
      %547 = arith.cmpi slt, %545, %546 : vector<1x256xi32>
      %548 = arith.andi %543, %547 : vector<1x256xi1>
      %cst_221 = arith.constant 0.000000e+00 : f32
      %549 = vector.broadcast %cst_221 : f32 to vector<1x256xf32>
      %c6 = arith.constant 6 : index
      %550 = memref.load %arg3[%c6] : memref<98xf32, #tpu.memory_space<smem>>
      %c0_222 = arith.constant 0 : index
      %c6_223 = arith.constant 6 : index
      %551 = vector.load %arg7[%c0_222, %c6_223] : memref<2x358xf32, #tpu.memory_space<vmem>>, vector<1x256xf32>
      %552 = vector.broadcast %550 : f32 to vector<1x256xf32>
      %553 = arith.mulf %552, %551 : vector<1x256xf32>
      %554 = arith.addf %549, %553 : vector<1x256xf32>
      %c13 = arith.constant 13 : index
      %555 = memref.load %arg3[%c13] : memref<98xf32, #tpu.memory_space<smem>>
      %c0_224 = arith.constant 0 : index
      %c22_225 = arith.constant 22 : index
      %556 = vector.load %arg7[%c0_224, %c22_225] : memref<2x358xf32, #tpu.memory_space<vmem>>, vector<1x256xf32>
      %557 = vector.broadcast %555 : f32 to vector<1x256xf32>
      %558 = arith.mulf %557, %556 : vector<1x256xf32>
      %559 = arith.addf %554, %558 : vector<1x256xf32>
      %c20_226 = arith.constant 20 : index
      %560 = memref.load %arg3[%c20_226] : memref<98xf32, #tpu.memory_space<smem>>
      %c0_227 = arith.constant 0 : index
      %c38_228 = arith.constant 38 : index
      %561 = vector.load %arg7[%c0_227, %c38_228] : memref<2x358xf32, #tpu.memory_space<vmem>>, vector<1x256xf32>
      %562 = vector.broadcast %560 : f32 to vector<1x256xf32>
      %563 = arith.mulf %562, %561 : vector<1x256xf32>
      %564 = arith.addf %559, %563 : vector<1x256xf32>
      %c27 = arith.constant 27 : index
      %565 = memref.load %arg3[%c27] : memref<98xf32, #tpu.memory_space<smem>>
      %c0_229 = arith.constant 0 : index
      %c54_230 = arith.constant 54 : index
      %566 = vector.load %arg7[%c0_229, %c54_230] : memref<2x358xf32, #tpu.memory_space<vmem>>, vector<1x256xf32>
      %567 = vector.broadcast %565 : f32 to vector<1x256xf32>
      %568 = arith.mulf %567, %566 : vector<1x256xf32>
      %569 = arith.addf %564, %568 : vector<1x256xf32>
      %c34_231 = arith.constant 34 : index
      %570 = memref.load %arg3[%c34_231] : memref<98xf32, #tpu.memory_space<smem>>
      %c0_232 = arith.constant 0 : index
      %c70_233 = arith.constant 70 : index
      %571 = vector.load %arg7[%c0_232, %c70_233] : memref<2x358xf32, #tpu.memory_space<vmem>>, vector<1x256xf32>
      %572 = vector.broadcast %570 : f32 to vector<1x256xf32>
      %573 = arith.mulf %572, %571 : vector<1x256xf32>
      %574 = arith.addf %569, %573 : vector<1x256xf32>
      %c41 = arith.constant 41 : index
      %575 = memref.load %arg3[%c41] : memref<98xf32, #tpu.memory_space<smem>>
      %c0_234 = arith.constant 0 : index
      %c86_235 = arith.constant 86 : index
      %576 = vector.load %arg7[%c0_234, %c86_235] : memref<2x358xf32, #tpu.memory_space<vmem>>, vector<1x256xf32>
      %577 = vector.broadcast %575 : f32 to vector<1x256xf32>
      %578 = arith.mulf %577, %576 : vector<1x256xf32>
      %579 = arith.addf %574, %578 : vector<1x256xf32>
      %c48_236 = arith.constant 48 : index
      %580 = memref.load %arg3[%c48_236] : memref<98xf32, #tpu.memory_space<smem>>
      %c0_237 = arith.constant 0 : index
      %c102 = arith.constant 102 : index
      %581 = vector.load %arg7[%c0_237, %c102] : memref<2x358xf32, #tpu.memory_space<vmem>>, vector<1x256xf32>
      %582 = vector.broadcast %580 : f32 to vector<1x256xf32>
      %583 = arith.mulf %582, %581 : vector<1x256xf32>
      %584 = arith.addf %579, %583 : vector<1x256xf32>
      %c55 = arith.constant 55 : index
      %585 = memref.load %arg3[%c55] : memref<98xf32, #tpu.memory_space<smem>>
      %c1_238 = arith.constant 1 : index
      %c6_239 = arith.constant 6 : index
      %586 = vector.load %arg7[%c1_238, %c6_239] : memref<2x358xf32, #tpu.memory_space<vmem>>, vector<1x256xf32>
      %587 = vector.broadcast %585 : f32 to vector<1x256xf32>
      %588 = arith.mulf %587, %586 : vector<1x256xf32>
      %589 = arith.addf %584, %588 : vector<1x256xf32>
      %c62 = arith.constant 62 : index
      %590 = memref.load %arg3[%c62] : memref<98xf32, #tpu.memory_space<smem>>
      %c1_240 = arith.constant 1 : index
      %c22_241 = arith.constant 22 : index
      %591 = vector.load %arg7[%c1_240, %c22_241] : memref<2x358xf32, #tpu.memory_space<vmem>>, vector<1x256xf32>
      %592 = vector.broadcast %590 : f32 to vector<1x256xf32>
      %593 = arith.mulf %592, %591 : vector<1x256xf32>
      %594 = arith.addf %589, %593 : vector<1x256xf32>
      %c69_242 = arith.constant 69 : index
      %595 = memref.load %arg3[%c69_242] : memref<98xf32, #tpu.memory_space<smem>>
      %c1_243 = arith.constant 1 : index
      %c38_244 = arith.constant 38 : index
      %596 = vector.load %arg7[%c1_243, %c38_244] : memref<2x358xf32, #tpu.memory_space<vmem>>, vector<1x256xf32>
      %597 = vector.broadcast %595 : f32 to vector<1x256xf32>
      %598 = arith.mulf %597, %596 : vector<1x256xf32>
      %599 = arith.addf %594, %598 : vector<1x256xf32>
      %c76 = arith.constant 76 : index
      %600 = memref.load %arg3[%c76] : memref<98xf32, #tpu.memory_space<smem>>
      %c1_245 = arith.constant 1 : index
      %c54_246 = arith.constant 54 : index
      %601 = vector.load %arg7[%c1_245, %c54_246] : memref<2x358xf32, #tpu.memory_space<vmem>>, vector<1x256xf32>
      %602 = vector.broadcast %600 : f32 to vector<1x256xf32>
      %603 = arith.mulf %602, %601 : vector<1x256xf32>
      %604 = arith.addf %599, %603 : vector<1x256xf32>
      %c83_247 = arith.constant 83 : index
      %605 = memref.load %arg3[%c83_247] : memref<98xf32, #tpu.memory_space<smem>>
      %c1_248 = arith.constant 1 : index
      %c70_249 = arith.constant 70 : index
      %606 = vector.load %arg7[%c1_248, %c70_249] : memref<2x358xf32, #tpu.memory_space<vmem>>, vector<1x256xf32>
      %607 = vector.broadcast %605 : f32 to vector<1x256xf32>
      %608 = arith.mulf %607, %606 : vector<1x256xf32>
      %609 = arith.addf %604, %608 : vector<1x256xf32>
      %c90 = arith.constant 90 : index
      %610 = memref.load %arg3[%c90] : memref<98xf32, #tpu.memory_space<smem>>
      %c1_250 = arith.constant 1 : index
      %c86_251 = arith.constant 86 : index
      %611 = vector.load %arg7[%c1_250, %c86_251] : memref<2x358xf32, #tpu.memory_space<vmem>>, vector<1x256xf32>
      %612 = vector.broadcast %610 : f32 to vector<1x256xf32>
      %613 = arith.mulf %612, %611 : vector<1x256xf32>
      %614 = arith.addf %609, %613 : vector<1x256xf32>
      %c97_252 = arith.constant 97 : index
      %615 = memref.load %arg3[%c97_252] : memref<98xf32, #tpu.memory_space<smem>>
      %c1_253 = arith.constant 1 : index
      %c102_254 = arith.constant 102 : index
      %616 = vector.load %arg7[%c1_253, %c102_254] : memref<2x358xf32, #tpu.memory_space<vmem>>, vector<1x256xf32>
      %617 = vector.broadcast %615 : f32 to vector<1x256xf32>
      %618 = arith.mulf %617, %616 : vector<1x256xf32>
      %619 = arith.addf %614, %618 : vector<1x256xf32>
      %cst_255 = arith.constant 0.000000e+00 : f32
      %620 = vector.broadcast %cst_255 : f32 to vector<1x256xf32>
      %621 = arith.select %548, %619, %620 : vector<1x256xi1>, vector<1x256xf32>
      %622 = arith.addf %539, %621 : vector<1x256xf32>
      %623 = arith.negf %622 : vector<1x256xf32>
      %624 = math.exp %623 : vector<1x256xf32>
      %cst_256 = arith.constant 1.000000e+00 : f32
      %625 = vector.broadcast %cst_256 : f32 to vector<1x256xf32>
      %626 = arith.addf %625, %624 : vector<1x256xf32>
      %627 = arith.divf %625, %626 : vector<1x256xf32>
      %c0_257 = arith.constant 0 : index
      %c0_258 = arith.constant 0 : index
      %c0_259 = arith.constant 0 : index
      %628 = vector.load %arg4[%c0_257, %c0_258, %c0_259] : memref<1x1x256xf32, #tpu.memory_space<vmem>>, vector<1x1x256xf32>
      %629 = vector.shape_cast %628 : vector<1x1x256xf32> to vector<1x256xf32>
      %630 = vector.shape_cast %627 : vector<1x256xf32> to vector<1x1x256xf32>
      tpu.vector_store %arg4[%c0_257, %c0_258, %c0_259], %630 {strides = array<i32>} : memref<1x1x256xf32, #tpu.memory_space<vmem>>, vector<1x1x256xf32>,
    } else {
    }
    return
  }
  func.func @transform_0(%arg0: i32, %arg1: i32) -> (i32, i32, i32) {
    %c0_i32 = arith.constant 0 : i32
    %c0_i32_0 = arith.constant 0 : i32
    return %arg0, %arg1, %c0_i32 : i32, i32, i32
  }
  func.func @transform_1(%arg0: i32, %arg1: i32) -> i32 {
    %c0_i32 = arith.constant 0 : i32
    %c0_i32_0 = arith.constant 0 : i32
    return %c0_i32 : i32
  }
  func.func @transform_2(%arg0: i32, %arg1: i32) -> (i32, i32, i32) {
    %c0_i32 = arith.constant 0 : i32
    %c0_i32_0 = arith.constant 0 : i32
    %c0_i32_1 = arith.constant 0 : i32
    return %arg0, %c0_i32, %c0_i32_0 : i32, i32, i32
  }
}

</mosaic_0001>

<llo_original>
// kernel: tpu_custom_call.1
$region0: #{tpu_custom_call.1}
  #allocation0 [shape = 'u32[]', space=smem, size = 0x4, offset = 0x4, fixed_abs, tag = 'smem constant byte address 0x4 - core index']
  #allocation1 [shape = 'u32[144,128]{1,0:T(1,128)}', space=vmem, size = 0x12000, scoped, tag = 'internal scratch']
  #allocation2 [shape = 'f32[1,256]{1,0:T(1,128)}', space=vmem, size = 0x400, scoped, tag = 'scratch operand']
  #allocation3 [shape = 'f32[1,256]{1,0:T(1,128)}', space=vmem, size = 0x400, scoped, tag = 'scratch operand']
  #allocation4 [shape = 'f32[2,358]{1,0:T(2,128)}', space=vmem, size = 0xc00, scoped, tag = 'scratch operand']
  %s0 = inlined_call_operand.hbm [shape: f32[2,4,256], index: 0, kind: input, shape index: {}]
  %s1 = inlined_call_operand.vmem [shape: f32[98], index: 1, kind: input, shape index: {}]
  %s2 = inlined_call_operand.hbm [shape: f32[2,1,256], index: 2, kind: output, shape index: {}]
  %s3 = sld [smem:[#allocation0]]
  $region57: #{tpu_custom_call.1} parent=0
    _
  %s5 = ssub.s32 1, %s3
  %s6 = scalar_select 0, %s5, %s3
  $region1: #{tpu_custom_call.1} parent=0
    #allocation5 [shape = 'u8[8192]{0}', space=vmem, size = 0x2000, scoped, tag = 'input window, operand 0']
    #allocation6 [shape = 's32[2]{0}', space=sflag, size = 0x8, scoped, tag = 'scoped memory for tpu_custom_call.1']
    #allocation7 [shape = 's32[2]{0}', space=sflag, size = 0x8, scoped, tag = 'scoped memory for tpu_custom_call.1']
    #allocation8 [shape = 's32[2]{0}', space=sflag, size = 0x8, scoped, tag = 'scoped memory for tpu_custom_call.1']
    #allocation9 [shape = 'u8[512]{0}', space=smem, size = 0x200, scoped, tag = 'input window, operand 1, single buffered']
    #allocation10 [shape = 'u8[2048]{0}', space=vmem, size = 0x800, scoped, tag = 'output window, operand 0']
    %7 = vsyncpa [#allocation6], 0
    %s8 = scalar_lea.sflag [#allocation6], 1
    %9 = vsyncpa %s8, 0
    %10 = vsyncpa [#allocation8], 0
    %11 = vsyncpa [#allocation7], 0
    %s12 = scalar_lea.sflag [#allocation7], 1
    %13 = vsyncpa %s12, 0
    loop: start=0, step=1, limit=4
    $region2: #{tpu_custom_call.1} parent=1 // loop_pre_header
      _
    $region3: #{tpu_custom_call.1} parent=1 // loop_header
      %s15 = sphi 0, %s19
      %p16 = scmp.ge.s32.totalorder %s15, 4
      %s22 = sphi 0, %s34
      %s23 = sphi 0, %s30
      %s24 = sphi 0, %s22
      %s25 = sphi 0, %s23
      %s26 = sphi 0, %s24
      %s27 = sphi 0, %s25
      %s39 = sphi 0, %s41
      %s42 = sphi 0, %s39
      %s43 = sphi 0, %s42
      %s59 = sphi 0, %s43
      %s63 = sphi 0, %s63
      %s65 = sphi 0, %s63
      %s66 = sphi 0, %s65
      %s80 = sphi 0, %s66
      %s86 = sphi 0, %s88
      %s89 = sphi 0, %s86
      %s90 = sphi 0, %s89
      %s106 = sphi 0, %s90
    $region4: #{tpu_custom_call.1} parent=1 // loop_header_branch
      %18 = sbr.rel (%p16) target = $region8
    $region5: #{tpu_custom_call.1} parent=1 // loop_body
      %s20 = ssub.s32 %s15, 1
      %s21 = ssub.s32 %s15, 2
      %s28 = sadd.s32 1, %s23
      %p29 = scmp.ge.s32.totalorder %s28, 1
      %s30 = scalar_select %p29, 0, %s28
      %s31 = sadd.s32 1, %s22
      %s32 = scalar_select %p29, %s31, %s22
      %p33 = scmp.ge.s32.totalorder %s32, 2
      %s34 = scalar_select %p33, 0, %s32
      %s35 = ssub.s32 %s22, %s34
      %s36 = ssub.s32 %s23, %s30
      %s37 = sor.u32 %s35, %s36
      %p38 = scmp.eq.s32.totalorder %s37, 0
      %s40 = sadd.s32 %s39, 1
      %s41 = scalar_select %p38, %s39, %s40
      %p44 = pneg %p38
      %p45 = scmp.eq.s32.totalorder %s15, 1
      %p46 = por %p44, %p45
      %p47 = scmp.ne.s32.totalorder %s39, %s42
      %p48 = scmp.eq.s32.totalorder %s15, 0
      %p49 = por %p47, %p48
      %p50 = scmp.ne.s32.totalorder %s39, %s42
      %p51 = scmp.eq.s32.totalorder %s20, 1
      %p52 = por %p50, %p51
      %p53 = scmp.ne.s32.totalorder %s42, %s43
      %p54 = scmp.eq.s32.totalorder %s20, 0
      %p55 = por %p53, %p54
      %p56 = scmp.ne.s32.totalorder %s42, %s43
      %p57 = scmp.eq.s32.totalorder %s21, 1
      %p58 = por %p56, %p57
      %p60 = scmp.ne.s32.totalorder %s43, %s59
      %p61 = scmp.eq.s32.totalorder %s21, 0
      %p62 = por %p60, %p61
      %s64 = sadd.s32 %s63, 1
      %p67 = scmp.eq.s32.totalorder %s15, 1
      %p68 = scmp.ne.s32.totalorder %s63, %s65
      %p69 = scmp.eq.s32.totalorder %s15, 0
      %p70 = por %p68, %p69
      %p71 = scmp.ne.s32.totalorder %s63, %s65
      %p72 = scmp.eq.s32.totalorder %s20, 1
      %p73 = por %p71, %p72
      %p74 = scmp.ne.s32.totalorder %s65, %s66
      %p75 = scmp.eq.s32.totalorder %s20, 0
      %p76 = por %p74, %p75
      %p77 = scmp.ne.s32.totalorder %s65, %s66
      %p78 = scmp.eq.s32.totalorder %s21, 1
      %p79 = por %p77, %p78
      %p81 = scmp.ne.s32.totalorder %s66, %s80
      %p82 = scmp.eq.s32.totalorder %s21, 0
      %p83 = por %p81, %p82
      %s84 = ssub.s32 %s22, %s34
      %p85 = scmp.eq.s32.totalorder %s84, 0
      %s87 = sadd.s32 %s86, 1
      %s88 = scalar_select %p85, %s86, %s87
      %p91 = pneg %p85
      %p92 = scmp.eq.s32.totalorder %s15, 1
      %p93 = por %p91, %p92
      %p94 = scmp.ne.s32.totalorder %s86, %s89
      %p95 = scmp.eq.s32.totalorder %s15, 0
      %p96 = por %p94, %p95
      %p97 = scmp.ne.s32.totalorder %s86, %s89
      %p98 = scmp.eq.s32.totalorder %s20, 1
      %p99 = por %p97, %p98
      %p100 = scmp.ne.s32.totalorder %s89, %s90
      %p101 = scmp.eq.s32.totalorder %s20, 0
      %p102 = por %p100, %p101
      %p103 = scmp.ne.s32.totalorder %s89, %s90
      %p104 = scmp.eq.s32.totalorder %s21, 1
      %p105 = por %p103, %p104
      %p107 = scmp.ne.s32.totalorder %s90, %s106
      %p108 = scmp.eq.s32.totalorder %s21, 0
      %p109 = por %p107, %p108
      %p110 = scmp.le.s32.totalorder 1, %s15
      %p111 = scmp.lt.s32.totalorder %s15, 3
      %p112 = pnand %p110, %p111
      %p113 = pneg %p112
      // Predicated region
      $region9: #{tpu_custom_call.1} parent=5 // pred_check
        _
      $region10: #{tpu_custom_call.1} parent=5 // pred_check_branch
        %115 = sbr.rel (%p112) target = $region12
      $region11: #{tpu_custom_call.1} parent=5 // pred_region
        %s116 = ssub.s32 %s15, 1
        // Predicated region
        $region13: #{tpu_custom_call.1} parent=11 // pred_check
          %p117 = pneg %p76
        $region14: #{tpu_custom_call.1} parent=11 // pred_check_branch
          %119 = sbr.rel (%p117) target = $region16
        $region15: #{tpu_custom_call.1} parent=11 // pred_region
          %s121 = ssub.s32 16, 16
          %122 = vsyncadd [#allocation8], %s121
          %s124 = sshll.u32 %s1, 4
          %s125 = int_to_ptr.vmem [resolvable:$true] %s124
          %127 = dma.vmem_to_smem %s125, 16, [#allocation9], [#allocation8]
        $region16: #{tpu_custom_call.1} parent=11 // pred_fallthru
          _
      $region12: #{tpu_custom_call.1} parent=5 // pred_fallthru
        _
      %p128 = scmp.lt.s32.totalorder %s15, 2
      // Predicated region
      $region17: #{tpu_custom_call.1} parent=5 // pred_check
        %p129 = pneg %p128
      $region18: #{tpu_custom_call.1} parent=5 // pred_check_branch
        %131 = sbr.rel (%p129) target = $region20
      $region19: #{tpu_custom_call.1} parent=5 // pred_region
        // Predicated region
        $region21: #{tpu_custom_call.1} parent=19 // pred_check
          %p132 = pneg %p49
        $region22: #{tpu_custom_call.1} parent=19 // pred_check_branch
          %134 = sbr.rel (%p132) target = $region24
        $region23: #{tpu_custom_call.1} parent=19 // pred_region
          %s135 = sand.u32 %s39, 1
          %s136 = scalar_lea.sflag [#allocation6], %s135
          %s137 = sand.u32 %s39, 1
          %s138 = smul.addr %s137, 8
          %s139 = scalar_lea.vmem [#allocation5], %s138
          %s141 = ssub.s32 128, 128
          %142 = vsyncadd %s136, %s141
          %s143 = smul.addr %s23, 2
          %s144 = smul.addr %s22, 2
          %s145 = sadd.s32 %s143, %s144
          %s146 = smul.addr %s145, 64
          %s147 = scalar_lea.hbm %s0, %s146
          %s149 = sshll.u32 %s139, 4
          %s150 = int_to_ptr.vmem [resolvable:$true] %s149
          %152 = dma.hbm_to_vmem [thread:$0]  %s147, 128, %s150, %s136
        $region24: #{tpu_custom_call.1} parent=19 // pred_fallthru
          _
      $region20: #{tpu_custom_call.1} parent=5 // pred_fallthru
        _
      %p153 = scmp.le.s32.totalorder 1, %s15
      %p154 = scmp.lt.s32.totalorder %s15, 3
      %p155 = pnand %p153, %p154
      %p156 = pneg %p155
      // Predicated region
      $region25: #{tpu_custom_call.1} parent=5 // pred_check
        _
      $region26: #{tpu_custom_call.1} parent=5 // pred_check_branch
        %158 = sbr.rel (%p155) target = $region28
      $region27: #{tpu_custom_call.1} parent=5 // pred_region
        %s159 = ssub.s32 %s15, 1
        %s160 = sand.u32 %s42, 1
        %s161 = scalar_lea.sflag [#allocation6], %s160
        %s162 = sand.u32 %s42, 1
        %s163 = smul.addr %s162, 8
        %s164 = scalar_lea.vmem [#allocation5], %s163
        // Predicated region
        $region29: #{tpu_custom_call.1} parent=27 // pred_check
          %p165 = pneg %p55
        $region30: #{tpu_custom_call.1} parent=27 // pred_check_branch
          %167 = sbr.rel (%p165) target = $region32
        $region31: #{tpu_custom_call.1} parent=27 // pred_region
          %168 = dma.done %s161, 128
        $region32: #{tpu_custom_call.1} parent=27 // pred_fallthru
          _
        // Predicated region
        $region33: #{tpu_custom_call.1} parent=27 // pred_check
          %p169 = pneg %p76
        $region34: #{tpu_custom_call.1} parent=27 // pred_check_branch
          %171 = sbr.rel (%p169) target = $region36
        $region35: #{tpu_custom_call.1} parent=27 // pred_region
          %172 = dma.done [#allocation8], 16
        $region36: #{tpu_custom_call.1} parent=27 // pred_fallthru
          _
        %173 = sfence
        %s174 = sand.u32 %s42, 1
        %s175 = scalar_lea.sflag [#allocation6], %s174
        %s176 = sand.u32 %s42, 1
        %s177 = smul.addr %s176, 8
        %s178 = scalar_lea.vmem [#allocation5], %s177
        %p179 = pneg %p55
        %p180 = pneg %p52
        %p181 = pneg %p76
        %p182 = pneg %p73
        %p183 = pneg %p102
        %p184 = pneg %p99
        %s185 = sand.u32 %s89, 1
        %s186 = scalar_lea.sflag [#allocation7], %s185
        %s187 = sand.u32 %s89, 1
        %s188 = smul.addr %s187, 2
        %s189 = scalar_lea.vmem [#allocation10], %s188
        %p190 = scmp.eq.s32.totalorder %s25, 0
        // Predicated region
        $region37: #{tpu_custom_call.1} parent=27 // pred_check
          %p191 = pneg %p190
        $region38: #{tpu_custom_call.1} parent=27 // pred_check_branch
          %193 = sbr.rel (%p191) target = $region40
        $region39: #{tpu_custom_call.1} parent=27 // pred_region
          %v194 = vlaneseq
          %vm195 = vcmp.ge.s32.totalorder %v194, 0
          %vm196 = vcmp.lt.s32.totalorder %v194, 256
          %vm197 = vmand %vm195, %vm196
          %198 = vst.msk [vmem:[#allocation2] sm:$0x3] %vm197, 0.0
          %199 = vst.msk [vmem:[#allocation3] sm:$0x3] %vm197, -inf
        $region40: #{tpu_custom_call.1} parent=27 // pred_fallthru
          _
        %v200 = vld [vmem:[#allocation2] sm:$0x3]
        %v201 = vld [vmem:[#allocation3] sm:$0x3]
        %v202 = vld [vmem:[%s164] sm:$0xff]
        %v204 = vcombine.high %v202, %v202
        %vm206 = vcmask 1043456
        %v207 = vsel %vm206, %v202, 0.0
        %v208 = vrot.slane %v207, 4
        %v209 = vadd.f32 %v207, %v208
        %v210 = vrot.slane %v209, 2
        %v211 = vadd.f32 %v209, %v210
        %v212 = vrot.slane %v211, 1
        %v213 = vadd.f32 %v211, %v212
        %v214 = vsel %vm206, %v204, 0.0
        %v215 = vrot.slane %v214, 4
        %v216 = vadd.f32 %v214, %v215
        %v217 = vrot.slane %v216, 2
        %v218 = vadd.f32 %v216, %v217
        %v219 = vrot.slane %v218, 1
        %v220 = vadd.f32 %v218, %v219
        %v223 = vcombine.low %v213, %v220
        %v225 = vunpack.c.l.s4 1966171168
        %v226 = vunpack.c.0.s8 %v225
        %v227 = vlaneseq
        %v228 = vshrl.u32 %v227, 7
        %v229 = vsub.s32 %v226, %v228
        %v230 = vrot.slane %v223, %v229
        %v232 = vunpack.c.l.s4 1966171168
        %v233 = vunpack.c.0.s8 %v232
        %v234 = vlaneseq
        %v235 = vshrl.u32 %v234, 7
        %v236 = vsub.s32 %v233, %v235
        %v237 = vrot.slane %v230, %v236
        %v239 = vadd.f32 %v200, %v237
        %v240 = vsel %vm206, %v202, -inf
        %v241 = vrot.slane %v240, 4
        %v242 = vmax.f32 %v240, %v241
        %v243 = vrot.slane %v242, 2
        %v244 = vmax.f32 %v242, %v243
        %v245 = vrot.slane %v244, 1
        %v246 = vmax.f32 %v244, %v245
        %v247 = vsel %vm206, %v204, -inf
        %v248 = vrot.slane %v247, 4
        %v249 = vmax.f32 %v247, %v248
        %v250 = vrot.slane %v249, 2
        %v251 = vmax.f32 %v249, %v250
        %v252 = vrot.slane %v251, 1
        %v253 = vmax.f32 %v251, %v252
        %v256 = vcombine.low %v246, %v253
        %v258 = vunpack.c.l.s4 1966171168
        %v259 = vunpack.c.0.s8 %v258
        %v260 = vlaneseq
        %v261 = vshrl.u32 %v260, 7
        %v262 = vsub.s32 %v259, %v261
        %v263 = vrot.slane %v256, %v262
        %v265 = vunpack.c.l.s4 1966171168
        %v266 = vunpack.c.0.s8 %v265
        %v267 = vlaneseq
        %v268 = vshrl.u32 %v267, 7
        %v269 = vsub.s32 %v266, %v268
        %v270 = vrot.slane %v263, %v269
        %v272 = vmax.f32 %v201, %v270
        %v273 = vlaneseq
        %vm274 = vcmp.ge.s32.totalorder %v273, 0
        %vm275 = vcmp.lt.s32.totalorder %v273, 256
        %vm276 = vmand %vm274, %vm275
        %277 = vst.msk [vmem:[#allocation2] sm:$0x3] %vm276, %v239
        %278 = vst.msk [vmem:[#allocation3] sm:$0x3] %vm276, %v272
        // Predicated region
        $region41: #{tpu_custom_call.1} parent=27 // pred_check
          %p279 = pneg %p190
        $region42: #{tpu_custom_call.1} parent=27 // pred_check_branch
          %281 = sbr.rel (%p279) target = $region44
        $region43: #{tpu_custom_call.1} parent=27 // pred_region
          %v282 = vmul.f32 %v239, 0.25
          %vm283 = vcmask 1041408
          %vm284 = vcmask 1043458
          %vm285 = vmor %vm284, %vm283
          %vm286 = vcmask 832516
          %vm287 = vmor %vm286, %vm285
          %288 = vst.msk [vmem:[#allocation4] sm:$0x3f] %vm287, 0.0
          %290 = vrot.lane.b32.xlu0 %v282, 51
          %v291 = vpop.permute.xlu0 %290
          %v292 = vrot.slane %v291, 7
          %vm293 = vcmask 416768
          %v294 = vsel %vm293, %v292, %v291
          %vm296 = vcmp.ge.s32.totalorder %v273, 51
          %vm297 = vcmp.lt.s32.totalorder %v273, 307
          %vm298 = vmand %vm296, %vm297
          %299 = vst.msk [vmem:[#allocation4] ss:$2 sm:$0x7] %vm298, %v294
          %301 = vrot.lane.b32.xlu0 %v272, 51
          %v302 = vpop.permute.xlu0 %301
          %v303 = vrot.slane %v302, 7
          %v304 = vsel %vm293, %v303, %v302
          %s306 = scalar_lea.vmem [#allocation4], 1
          %307 = vst.msk [vmem:[%s306] ss:$2 sm:$0x7] %vm298, %v304
          %v308 = vlaneseq
          %v309 = vand.u32 %v308, 127
          %v310 = vadd.s32 %v309, 128
          %vm311 = vcmp.lt.s32.totalorder %v309, 0
          %v312 = vsub.s32 0, %v309
          %v313 = vsel %vm311, %v312, %v309
          %v314 = vshrl.u32 %v313, 4
          %v315 = vand.u32 %v313, 15
          %v316 = vsub.s32 0, %v315
          %v317 = vsel %vm311, %v316, %v315
          %vm318 = vcmp.lt.s32.totalorder %v310, 0
          %v319 = vsub.s32 0, %v310
          %v320 = vsel %vm318, %v319, %v310
          %v321 = vshrl.u32 %v320, 4
          %v322 = vand.u32 %v320, 15
          %v323 = vsub.s32 0, %v322
          %v324 = vsel %vm318, %v323, %v322
          %vm325 = vcmp.ne.s32.totalorder %v317, 0
          %vm326 = vcmp.ne.s32.totalorder %v324, 0
          %vm327 = vcmp.lt.s32.totalorder %v317, 0
          %vm328 = vcmp.lt.s32.totalorder %v324, 0
          %vm329 = vmand %vm327, %vm325
          %vm330 = vmand %vm328, %vm326
          %v331 = vadd.s32 %v317, 16
          %v332 = vadd.s32 %v324, 16
          %v333 = vsel %vm329, %v331, %v317
          %v334 = vsel %vm330, %v332, %v324
          %v335 = vadd.s32 %v333, 4294967293
          %v336 = vadd.s32 %v334, 4294967293
          %vm337 = vcmp.ge.s32.totalorder %v335, 0
          %vm338 = vcmp.ge.s32.totalorder %v336, 0
          %vm339 = vcmp.lt.s32.totalorder %v335, 16
          %vm340 = vcmp.lt.s32.totalorder %v336, 16
          %vm341 = vmand %vm337, %vm339
          %vm342 = vmand %vm338, %vm340
          %s343 = sld [smem:[#allocation9]]
          %v344 = vld [vmem:[#allocation4] ss:$2 sm:$0x3]
          %v345 = vstv %s343
          %v346 = vmul.f32 %v345, %v344
          %v347 = vadd.f32 %v346, 0.0
          %s348 = sld [smem:[#allocation9 + $0x7]]
          %v349 = vld [vmem:[#allocation4] ss:$2 sm:$0x7]
          %v350 = vstv %s348
          %v351 = vmul.f32 %v350, %v349
          %353 = vrot.lane.b32.xlu0 %v351, 112
          %v354 = vpop.permute.xlu0 %353
          %v355 = vrot.slane %v354, 1
          %vm356 = vcmask 916480
          %v357 = vsel %vm356, %v354, %v355
          %v359 = vadd.f32 %v347, %v357
          %s360 = sld [smem:[#allocation9 + $0xe]]
          %v361 = vstv %s360
          %v362 = vmul.f32 %v361, %v349
          %364 = vrot.lane.b32.xlu0 %v362, 96
          %v365 = vpop.permute.xlu0 %364
          %v366 = vrot.slane %v365, 1
          %vm367 = vcmask 785408
          %v368 = vsel %vm367, %v365, %v366
          %v370 = vadd.f32 %v359, %v368
          %s371 = sld [smem:[#allocation9 + $0x15]]
          %v372 = vstv %s371
          %v373 = vmul.f32 %v372, %v349
          %375 = vrot.lane.b32.xlu0 %v373, 80
          %v376 = vpop.permute.xlu0 %375
          %v377 = vrot.slane %v376, 1
          %vm378 = vcmask 654336
          %v379 = vsel %vm378, %v376, %v377
          %v381 = vadd.f32 %v370, %v379
          %s382 = sld [smem:[#allocation9 + $0x1c]]
          %v383 = vstv %s382
          %v384 = vmul.f32 %v383, %v349
          %386 = vrot.lane.b32.xlu0 %v384, 64
          %v387 = vpop.permute.xlu0 %386
          %v388 = vrot.slane %v387, 1
          %vm389 = vcmask 523264
          %v390 = vsel %vm389, %v387, %v388
          %v392 = vadd.f32 %v381, %v390
          %s393 = sld [smem:[#allocation9 + $0x23]]
          %v394 = vstv %s393
          %v395 = vmul.f32 %v394, %v349
          %397 = vrot.lane.b32.xlu0 %v395, 48
          %v398 = vpop.permute.xlu0 %397
          %v399 = vrot.slane %v398, 1
          %vm400 = vcmask 392192
          %v401 = vsel %vm400, %v398, %v399
          %v403 = vadd.f32 %v392, %v401
          %s404 = sld [smem:[#allocation9 + $0x2a]]
          %v405 = vstv %s404
          %v406 = vmul.f32 %v405, %v349
          %408 = vrot.lane.b32.xlu0 %v406, 32
          %v409 = vpop.permute.xlu0 %408
          %v410 = vrot.slane %v409, 1
          %vm411 = vcmask 261120
          %v412 = vsel %vm411, %v409, %v410
          %v414 = vadd.f32 %v403, %v412
          %s415 = sld [smem:[#allocation9 + $0x31]]
          %v416 = vld [vmem:[%s306] ss:$2 sm:$0x3]
          %v417 = vstv %s415
          %v418 = vmul.f32 %v417, %v416
          %v419 = vadd.f32 %v414, %v418
          %s420 = sld [smem:[#allocation9 + $0x38]]
          %v421 = vld [vmem:[%s306] ss:$2 sm:$0x7]
          %v422 = vstv %s420
          %v423 = vmul.f32 %v422, %v421
          %425 = vrot.lane.b32.xlu0 %v423, 112
          %v426 = vpop.permute.xlu0 %425
          %v427 = vrot.slane %v426, 1
          %v428 = vsel %vm356, %v426, %v427
          %v430 = vadd.f32 %v419, %v428
          %s431 = sld [smem:[#allocation9 + $0x3f]]
          %v432 = vstv %s431
          %v433 = vmul.f32 %v432, %v421
          %435 = vrot.lane.b32.xlu0 %v433, 96
          %v436 = vpop.permute.xlu0 %435
          %v437 = vrot.slane %v436, 1
          %v438 = vsel %vm367, %v436, %v437
          %v440 = vadd.f32 %v430, %v438
          %s441 = sld [smem:[#allocation9 + $0x46]]
          %v442 = vstv %s441
          %v443 = vmul.f32 %v442, %v421
          %445 = vrot.lane.b32.xlu0 %v443, 80
          %v446 = vpop.permute.xlu0 %445
          %v447 = vrot.slane %v446, 1
          %v448 = vsel %vm378, %v446, %v447
          %v450 = vadd.f32 %v440, %v448
          %s451 = sld [smem:[#allocation9 + $0x4d]]
          %v452 = vstv %s451
          %v453 = vmul.f32 %v452, %v421
          %455 = vrot.lane.b32.xlu0 %v453, 64
          %v456 = vpop.permute.xlu0 %455
          %v457 = vrot.slane %v456, 1
          %v458 = vsel %vm389, %v456, %v457
          %v460 = vadd.f32 %v450, %v458
          %s461 = sld [smem:[#allocation9 + $0x54]]
          %v462 = vstv %s461
          %v463 = vmul.f32 %v462, %v421
          %465 = vrot.lane.b32.xlu0 %v463, 48
          %v466 = vpop.permute.xlu0 %465
          %v467 = vrot.slane %v466, 1
          %v468 = vsel %vm400, %v466, %v467
          %v470 = vadd.f32 %v460, %v468
          %s471 = sld [smem:[#allocation9 + $0x5b]]
          %v472 = vstv %s471
          %v473 = vmul.f32 %v472, %v421
          %475 = vrot.lane.b32.xlu0 %v473, 32
          %v476 = vpop.permute.xlu0 %475
          %v477 = vrot.slane %v476, 1
          %v478 = vsel %vm411, %v476, %v477
          %v480 = vadd.f32 %v470, %v478
          %v482 = vlaneseq
          %v483 = vshrl.u32 %v482, 7
          %v484 = vsub.s32 0, %v483
          %v485 = vrot.slane %v480, %v484
          %v486 = vlaneseq
          %v487 = vshrl.u32 %v486, 7
          %v488 = vsub.s32 1, %v487
          %v489 = vrot.slane %v480, %v488
          %v492 = vsel %vm341, %v485, 0.0
          %v493 = vsel %vm342, %v489, 0.0
          %v494 = vadd.f32 %v492, 0.0
          %v495 = vadd.f32 %v493, 0.0
          %v496 = vadd.s32 %v333, 4294967294
          %v497 = vadd.s32 %v334, 4294967294
          %vm498 = vcmp.ge.s32.totalorder %v496, 0
          %vm499 = vcmp.ge.s32.totalorder %v497, 0
          %vm500 = vcmp.lt.s32.totalorder %v496, 16
          %vm501 = vcmp.lt.s32.totalorder %v497, 16
          %vm502 = vmand %vm498, %vm500
          %vm503 = vmand %vm499, %vm501
          %s504 = sld [smem:[#allocation9 + $0x1]]
          %v505 = vstv %s504
          %v506 = vmul.f32 %v505, %v349
          %v507 = vadd.f32 %v506, 0.0
          %s508 = sld [smem:[#allocation9 + $0x8]]
          %v509 = vstv %s508
          %v510 = vmul.f32 %v509, %v349
          %512 = vrot.lane.b32.xlu0 %v510, 112
          %v513 = vpop.permute.xlu0 %512
          %v514 = vrot.slane %v513, 1
          %v515 = vsel %vm356, %v513, %v514
          %v517 = vadd.f32 %v507, %v515
          %s518 = sld [smem:[#allocation9 + $0xf]]
          %v519 = vstv %s518
          %v520 = vmul.f32 %v519, %v349
          %522 = vrot.lane.b32.xlu0 %v520, 96
          %v523 = vpop.permute.xlu0 %522
          %v524 = vrot.slane %v523, 1
          %v525 = vsel %vm367, %v523, %v524
          %v527 = vadd.f32 %v517, %v525
          %s528 = sld [smem:[#allocation9 + $0x16]]
          %v529 = vstv %s528
          %v530 = vmul.f32 %v529, %v349
          %532 = vrot.lane.b32.xlu0 %v530, 80
          %v533 = vpop.permute.xlu0 %532
          %v534 = vrot.slane %v533, 1
          %v535 = vsel %vm378, %v533, %v534
          %v537 = vadd.f32 %v527, %v535
          %s538 = sld [smem:[#allocation9 + $0x1d]]
          %v539 = vstv %s538
          %v540 = vmul.f32 %v539, %v349
          %542 = vrot.lane.b32.xlu0 %v540, 64
          %v543 = vpop.permute.xlu0 %542
          %v544 = vrot.slane %v543, 1
          %v545 = vsel %vm389, %v543, %v544
          %v547 = vadd.f32 %v537, %v545
          %s548 = sld [smem:[#allocation9 + $0x24]]
          %v549 = vstv %s548
          %v550 = vmul.f32 %v549, %v349
          %552 = vrot.lane.b32.xlu0 %v550, 48
          %v553 = vpop.permute.xlu0 %552
          %v554 = vrot.slane %v553, 1
          %v555 = vsel %vm400, %v553, %v554
          %v557 = vadd.f32 %v547, %v555
          %s558 = sld [smem:[#allocation9 + $0x2b]]
          %v559 = vstv %s558
          %v560 = vmul.f32 %v559, %v349
          %562 = vrot.lane.b32.xlu0 %v560, 32
          %v563 = vpop.permute.xlu0 %562
          %v564 = vrot.slane %v563, 1
          %v565 = vsel %vm411, %v563, %v564
          %v567 = vadd.f32 %v557, %v565
          %s568 = sld [smem:[#allocation9 + $0x32]]
          %v569 = vstv %s568
          %v570 = vmul.f32 %v569, %v421
          %v571 = vadd.f32 %v567, %v570
          %s572 = sld [smem:[#allocation9 + $0x39]]
          %v573 = vstv %s572
          %v574 = vmul.f32 %v573, %v421
          %576 = vrot.lane.b32.xlu0 %v574, 112
          %v577 = vpop.permute.xlu0 %576
          %v578 = vrot.slane %v577, 1
          %v579 = vsel %vm356, %v577, %v578
          %v581 = vadd.f32 %v571, %v579
          %s582 = sld [smem:[#allocation9 + $0x40]]
          %v583 = vstv %s582
          %v584 = vmul.f32 %v583, %v421
          %586 = vrot.lane.b32.xlu0 %v584, 96
          %v587 = vpop.permute.xlu0 %586
          %v588 = vrot.slane %v587, 1
          %v589 = vsel %vm367, %v587, %v588
          %v591 = vadd.f32 %v581, %v589
          %s592 = sld [smem:[#allocation9 + $0x47]]
          %v593 = vstv %s592
          %v594 = vmul.f32 %v593, %v421
          %596 = vrot.lane.b32.xlu0 %v594, 80
          %v597 = vpop.permute.xlu0 %596
          %v598 = vrot.slane %v597, 1
          %v599 = vsel %vm378, %v597, %v598
          %v601 = vadd.f32 %v591, %v599
          %s602 = sld [smem:[#allocation9 + $0x4e]]
          %v603 = vstv %s602
          %v604 = vmul.f32 %v603, %v421
          %606 = vrot.lane.b32.xlu0 %v604, 64
          %v607 = vpop.permute.xlu0 %606
          %v608 = vrot.slane %v607, 1
          %v609 = vsel %vm389, %v607, %v608
          %v611 = vadd.f32 %v601, %v609
          %s612 = sld [smem:[#allocation9 + $0x55]]
          %v613 = vstv %s612
          %v614 = vmul.f32 %v613, %v421
          %616 = vrot.lane.b32.xlu0 %v614, 48
          %v617 = vpop.permute.xlu0 %616
          %v618 = vrot.slane %v617, 1
          %v619 = vsel %vm400, %v617, %v618
          %v621 = vadd.f32 %v611, %v619
          %s622 = sld [smem:[#allocation9 + $0x5c]]
          %v623 = vstv %s622
          %v624 = vmul.f32 %v623, %v421
          %626 = vrot.lane.b32.xlu0 %v624, 32
          %v627 = vpop.permute.xlu0 %626
          %v628 = vrot.slane %v627, 1
          %v629 = vsel %vm411, %v627, %v628
          %v631 = vadd.f32 %v621, %v629
          %v633 = vlaneseq
          %v634 = vshrl.u32 %v633, 7
          %v635 = vsub.s32 0, %v634
          %v636 = vrot.slane %v631, %v635
          %v637 = vlaneseq
          %v638 = vshrl.u32 %v637, 7
          %v639 = vsub.s32 1, %v638
          %v640 = vrot.slane %v631, %v639
          %v641 = vlaneseq
          %v642 = vshrl.u32 %v641, 7
          %v643 = vsub.s32 2, %v642
          %v644 = vrot.slane %v631, %v643
          %645 = vrot.lane.b32.xlu0 %v636, 127
          %v646 = vpop.permute.xlu0 %645
          %647 = vrot.lane.b32.xlu0 %v640, 127
          %v648 = vpop.permute.xlu0 %647
          %649 = vrot.lane.b32.xlu0 %v644, 127
          %v650 = vpop.permute.xlu0 %649
          %vm651 = vcmask 1039360
          %v652 = vsel %vm651, %v646, %v648
          %v653 = vsel %vm651, %v648, %v650
          %v656 = vsel %vm502, %v652, 0.0
          %v657 = vsel %vm503, %v653, 0.0
          %v658 = vadd.f32 %v494, %v656
          %v659 = vadd.f32 %v495, %v657
          %v660 = vadd.s32 %v333, 4294967295
          %v661 = vadd.s32 %v334, 4294967295
          %vm662 = vcmp.ge.s32.totalorder %v660, 0
          %vm663 = vcmp.ge.s32.totalorder %v661, 0
          %vm664 = vcmp.lt.s32.totalorder %v660, 16
          %vm665 = vcmp.lt.s32.totalorder %v661, 16
          %vm666 = vmand %vm662, %vm664
          %vm667 = vmand %vm663, %vm665
          %s668 = sld [smem:[#allocation9 + $0x2]]
          %v669 = vstv %s668
          %v670 = vmul.f32 %v669, %v349
          %v671 = vadd.f32 %v670, 0.0
          %s672 = sld [smem:[#allocation9 + $0x9]]
          %v673 = vstv %s672
          %v674 = vmul.f32 %v673, %v349
          %676 = vrot.lane.b32.xlu0 %v674, 112
          %v677 = vpop.permute.xlu0 %676
          %v678 = vrot.slane %v677, 1
          %v679 = vsel %vm356, %v677, %v678
          %v681 = vadd.f32 %v671, %v679
          %s682 = sld [smem:[#allocation9 + $0x10]]
          %v683 = vstv %s682
          %v684 = vmul.f32 %v683, %v349
          %686 = vrot.lane.b32.xlu0 %v684, 96
          %v687 = vpop.permute.xlu0 %686
          %v688 = vrot.slane %v687, 1
          %v689 = vsel %vm367, %v687, %v688
          %v691 = vadd.f32 %v681, %v689
          %s692 = sld [smem:[#allocation9 + $0x17]]
          %v693 = vstv %s692
          %v694 = vmul.f32 %v693, %v349
          %696 = vrot.lane.b32.xlu0 %v694, 80
          %v697 = vpop.permute.xlu0 %696
          %v698 = vrot.slane %v697, 1
          %v699 = vsel %vm378, %v697, %v698
          %v701 = vadd.f32 %v691, %v699
          %s702 = sld [smem:[#allocation9 + $0x1e]]
          %v703 = vstv %s702
          %v704 = vmul.f32 %v703, %v349
          %706 = vrot.lane.b32.xlu0 %v704, 64
          %v707 = vpop.permute.xlu0 %706
          %v708 = vrot.slane %v707, 1
          %v709 = vsel %vm389, %v707, %v708
          %v711 = vadd.f32 %v701, %v709
          %s712 = sld [smem:[#allocation9 + $0x25]]
          %v713 = vstv %s712
          %v714 = vmul.f32 %v713, %v349
          %716 = vrot.lane.b32.xlu0 %v714, 48
          %v717 = vpop.permute.xlu0 %716
          %v718 = vrot.slane %v717, 1
          %v719 = vsel %vm400, %v717, %v718
          %v721 = vadd.f32 %v711, %v719
          %s722 = sld [smem:[#allocation9 + $0x2c]]
          %v723 = vstv %s722
          %v724 = vmul.f32 %v723, %v349
          %726 = vrot.lane.b32.xlu0 %v724, 32
          %v727 = vpop.permute.xlu0 %726
          %v728 = vrot.slane %v727, 1
          %v729 = vsel %vm411, %v727, %v728
          %v731 = vadd.f32 %v721, %v729
          %s732 = sld [smem:[#allocation9 + $0x33]]
          %v733 = vstv %s732
          %v734 = vmul.f32 %v733, %v421
          %v735 = vadd.f32 %v731, %v734
          %s736 = sld [smem:[#allocation9 + $0x3a]]
          %v737 = vstv %s736
          %v738 = vmul.f32 %v737, %v421
          %740 = vrot.lane.b32.xlu0 %v738, 112
          %v741 = vpop.permute.xlu0 %740
          %v742 = vrot.slane %v741, 1
          %v743 = vsel %vm356, %v741, %v742
          %v745 = vadd.f32 %v735, %v743
          %s746 = sld [smem:[#allocation9 + $0x41]]
          %v747 = vstv %s746
          %v748 = vmul.f32 %v747, %v421
          %750 = vrot.lane.b32.xlu0 %v748, 96
          %v751 = vpop.permute.xlu0 %750
          %v752 = vrot.slane %v751, 1
          %v753 = vsel %vm367, %v751, %v752
          %v755 = vadd.f32 %v745, %v753
          %s756 = sld [smem:[#allocation9 + $0x48]]
          %v757 = vstv %s756
          %v758 = vmul.f32 %v757, %v421
          %760 = vrot.lane.b32.xlu0 %v758, 80
          %v761 = vpop.permute.xlu0 %760
          %v762 = vrot.slane %v761, 1
          %v763 = vsel %vm378, %v761, %v762
          %v765 = vadd.f32 %v755, %v763
          %s766 = sld [smem:[#allocation9 + $0x4f]]
          %v767 = vstv %s766
          %v768 = vmul.f32 %v767, %v421
          %770 = vrot.lane.b32.xlu0 %v768, 64
          %v771 = vpop.permute.xlu0 %770
          %v772 = vrot.slane %v771, 1
          %v773 = vsel %vm389, %v771, %v772
          %v775 = vadd.f32 %v765, %v773
          %s776 = sld [smem:[#allocation9 + $0x56]]
          %v777 = vstv %s776
          %v778 = vmul.f32 %v777, %v421
          %780 = vrot.lane.b32.xlu0 %v778, 48
          %v781 = vpop.permute.xlu0 %780
          %v782 = vrot.slane %v781, 1
          %v783 = vsel %vm400, %v781, %v782
          %v785 = vadd.f32 %v775, %v783
          %s786 = sld [smem:[#allocation9 + $0x5d]]
          %v787 = vstv %s786
          %v788 = vmul.f32 %v787, %v421
          %790 = vrot.lane.b32.xlu0 %v788, 32
          %v791 = vpop.permute.xlu0 %790
          %v792 = vrot.slane %v791, 1
          %v793 = vsel %vm411, %v791, %v792
          %v795 = vadd.f32 %v785, %v793
          %v797 = vlaneseq
          %v798 = vshrl.u32 %v797, 7
          %v799 = vsub.s32 0, %v798
          %v800 = vrot.slane %v795, %v799
          %v801 = vlaneseq
          %v802 = vshrl.u32 %v801, 7
          %v803 = vsub.s32 1, %v802
          %v804 = vrot.slane %v795, %v803
          %v805 = vlaneseq
          %v806 = vshrl.u32 %v805, 7
          %v807 = vsub.s32 2, %v806
          %v808 = vrot.slane %v795, %v807
          %809 = vrot.lane.b32.xlu0 %v800, 126
          %v810 = vpop.permute.xlu0 %809
          %811 = vrot.lane.b32.xlu0 %v804, 126
          %v812 = vpop.permute.xlu0 %811
          %813 = vrot.lane.b32.xlu0 %v808, 126
          %v814 = vpop.permute.xlu0 %813
          %vm815 = vcmask 1031168
          %v816 = vsel %vm815, %v810, %v812
          %v817 = vsel %vm815, %v812, %v814
          %v820 = vsel %vm666, %v816, 0.0
          %v821 = vsel %vm667, %v817, 0.0
          %v822 = vadd.f32 %v658, %v820
          %v823 = vadd.f32 %v659, %v821
          %vm824 = vcmp.ge.s32.totalorder %v333, 0
          %vm825 = vcmp.ge.s32.totalorder %v334, 0
          %vm826 = vcmp.lt.s32.totalorder %v333, 16
          %vm827 = vcmp.lt.s32.totalorder %v334, 16
          %vm828 = vmand %vm824, %vm826
          %vm829 = vmand %vm825, %vm827
          %s830 = sld [smem:[#allocation9 + $0x3]]
          %v831 = vstv %s830
          %v832 = vmul.f32 %v831, %v349
          %v833 = vadd.f32 %v832, 0.0
          %s834 = sld [smem:[#allocation9 + $0xa]]
          %v835 = vstv %s834
          %v836 = vmul.f32 %v835, %v349
          %838 = vrot.lane.b32.xlu0 %v836, 112
          %v839 = vpop.permute.xlu0 %838
          %v840 = vrot.slane %v839, 1
          %v841 = vsel %vm356, %v839, %v840
          %v843 = vadd.f32 %v833, %v841
          %s844 = sld [smem:[#allocation9 + $0x11]]
          %v845 = vstv %s844
          %v846 = vmul.f32 %v845, %v349
          %848 = vrot.lane.b32.xlu0 %v846, 96
          %v849 = vpop.permute.xlu0 %848
          %v850 = vrot.slane %v849, 1
          %v851 = vsel %vm367, %v849, %v850
          %v853 = vadd.f32 %v843, %v851
          %s854 = sld [smem:[#allocation9 + $0x18]]
          %v855 = vstv %s854
          %v856 = vmul.f32 %v855, %v349
          %858 = vrot.lane.b32.xlu0 %v856, 80
          %v859 = vpop.permute.xlu0 %858
          %v860 = vrot.slane %v859, 1
          %v861 = vsel %vm378, %v859, %v860
          %v863 = vadd.f32 %v853, %v861
          %s864 = sld [smem:[#allocation9 + $0x1f]]
          %v865 = vstv %s864
          %v866 = vmul.f32 %v865, %v349
          %868 = vrot.lane.b32.xlu0 %v866, 64
          %v869 = vpop.permute.xlu0 %868
          %v870 = vrot.slane %v869, 1
          %v871 = vsel %vm389, %v869, %v870
          %v873 = vadd.f32 %v863, %v871
          %s874 = sld [smem:[#allocation9 + $0x26]]
          %v875 = vstv %s874
          %v876 = vmul.f32 %v875, %v349
          %878 = vrot.lane.b32.xlu0 %v876, 48
          %v879 = vpop.permute.xlu0 %878
          %v880 = vrot.slane %v879, 1
          %v881 = vsel %vm400, %v879, %v880
          %v883 = vadd.f32 %v873, %v881
          %s884 = sld [smem:[#allocation9 + $0x2d]]
          %v885 = vstv %s884
          %v886 = vmul.f32 %v885, %v349
          %888 = vrot.lane.b32.xlu0 %v886, 32
          %v889 = vpop.permute.xlu0 %888
          %v890 = vrot.slane %v889, 1
          %v891 = vsel %vm411, %v889, %v890
          %v893 = vadd.f32 %v883, %v891
          %s894 = sld [smem:[#allocation9 + $0x34]]
          %v895 = vstv %s894
          %v896 = vmul.f32 %v895, %v421
          %v897 = vadd.f32 %v893, %v896
          %s898 = sld [smem:[#allocation9 + $0x3b]]
          %v899 = vstv %s898
          %v900 = vmul.f32 %v899, %v421
          %902 = vrot.lane.b32.xlu0 %v900, 112
          %v903 = vpop.permute.xlu0 %902
          %v904 = vrot.slane %v903, 1
          %v905 = vsel %vm356, %v903, %v904
          %v907 = vadd.f32 %v897, %v905
          %s908 = sld [smem:[#allocation9 + $0x42]]
          %v909 = vstv %s908
          %v910 = vmul.f32 %v909, %v421
          %912 = vrot.lane.b32.xlu0 %v910, 96
          %v913 = vpop.permute.xlu0 %912
          %v914 = vrot.slane %v913, 1
          %v915 = vsel %vm367, %v913, %v914
          %v917 = vadd.f32 %v907, %v915
          %s918 = sld [smem:[#allocation9 + $0x49]]
          %v919 = vstv %s918
          %v920 = vmul.f32 %v919, %v421
          %922 = vrot.lane.b32.xlu0 %v920, 80
          %v923 = vpop.permute.xlu0 %922
          %v924 = vrot.slane %v923, 1
          %v925 = vsel %vm378, %v923, %v924
          %v927 = vadd.f32 %v917, %v925
          %s928 = sld [smem:[#allocation9 + $0x50]]
          %v929 = vstv %s928
          %v930 = vmul.f32 %v929, %v421
          %932 = vrot.lane.b32.xlu0 %v930, 64
          %v933 = vpop.permute.xlu0 %932
          %v934 = vrot.slane %v933, 1
          %v935 = vsel %vm389, %v933, %v934
          %v937 = vadd.f32 %v927, %v935
          %s938 = sld [smem:[#allocation9 + $0x57]]
          %v939 = vstv %s938
          %v940 = vmul.f32 %v939, %v421
          %942 = vrot.lane.b32.xlu0 %v940, 48
          %v943 = vpop.permute.xlu0 %942
          %v944 = vrot.slane %v943, 1
          %v945 = vsel %vm400, %v943, %v944
          %v947 = vadd.f32 %v937, %v945
          %s948 = sld [smem:[#allocation9 + $0x5e]]
          %v949 = vstv %s948
          %v950 = vmul.f32 %v949, %v421
          %952 = vrot.lane.b32.xlu0 %v950, 32
          %v953 = vpop.permute.xlu0 %952
          %v954 = vrot.slane %v953, 1
          %v955 = vsel %vm411, %v953, %v954
          %v957 = vadd.f32 %v947, %v955
          %v959 = vlaneseq
          %v960 = vshrl.u32 %v959, 7
          %v961 = vsub.s32 0, %v960
          %v962 = vrot.slane %v957, %v961
          %v963 = vlaneseq
          %v964 = vshrl.u32 %v963, 7
          %v965 = vsub.s32 1, %v964
          %v966 = vrot.slane %v957, %v965
          %v967 = vlaneseq
          %v968 = vshrl.u32 %v967, 7
          %v969 = vsub.s32 2, %v968
          %v970 = vrot.slane %v957, %v969
          %971 = vrot.lane.b32.xlu0 %v962, 125
          %v972 = vpop.permute.xlu0 %971
          %973 = vrot.lane.b32.xlu0 %v966, 125
          %v974 = vpop.permute.xlu0 %973
          %975 = vrot.lane.b32.xlu0 %v970, 125
          %v976 = vpop.permute.xlu0 %975
          %vm977 = vcmask 1022976
          %v978 = vsel %vm977, %v972, %v974
          %v979 = vsel %vm977, %v974, %v976
          %v982 = vsel %vm828, %v978, 0.0
          %v983 = vsel %vm829, %v979, 0.0
          %v984 = vadd.f32 %v822, %v982
          %v985 = vadd.f32 %v823, %v983
          %v986 = vadd.s32 %v333, 1
          %v987 = vadd.s32 %v334, 1
          %vm988 = vcmp.ge.s32.totalorder %v986, 0
          %vm989 = vcmp.ge.s32.totalorder %v987, 0
          %vm990 = vcmp.lt.s32.totalorder %v986, 16
          %vm991 = vcmp.lt.s32.totalorder %v987, 16
          %vm992 = vmand %vm988, %vm990
          %vm993 = vmand %vm989, %vm991
          %s994 = sld [smem:[#allocation9 + $0x4]]
          %v995 = vstv %s994
          %v996 = vmul.f32 %v995, %v349
          %v997 = vadd.f32 %v996, 0.0
          %s998 = sld [smem:[#allocation9 + $0xb]]
          %v999 = vstv %s998
          %v1000 = vmul.f32 %v999, %v349
          %1002 = vrot.lane.b32.xlu0 %v1000, 112
          %v1003 = vpop.permute.xlu0 %1002
          %v1004 = vrot.slane %v1003, 1
          %v1005 = vsel %vm356, %v1003, %v1004
          %v1007 = vadd.f32 %v997, %v1005
          %s1008 = sld [smem:[#allocation9 + $0x12]]
          %v1009 = vstv %s1008
          %v1010 = vmul.f32 %v1009, %v349
          %1012 = vrot.lane.b32.xlu0 %v1010, 96
          %v1013 = vpop.permute.xlu0 %1012
          %v1014 = vrot.slane %v1013, 1
          %v1015 = vsel %vm367, %v1013, %v1014
          %v1017 = vadd.f32 %v1007, %v1015
          %s1018 = sld [smem:[#allocation9 + $0x19]]
          %v1019 = vstv %s1018
          %v1020 = vmul.f32 %v1019, %v349
          %1022 = vrot.lane.b32.xlu0 %v1020, 80
          %v1023 = vpop.permute.xlu0 %1022
          %v1024 = vrot.slane %v1023, 1
          %v1025 = vsel %vm378, %v1023, %v1024
          %v1027 = vadd.f32 %v1017, %v1025
          %s1028 = sld [smem:[#allocation9 + $0x20]]
          %v1029 = vstv %s1028
          %v1030 = vmul.f32 %v1029, %v349
          %1032 = vrot.lane.b32.xlu0 %v1030, 64
          %v1033 = vpop.permute.xlu0 %1032
          %v1034 = vrot.slane %v1033, 1
          %v1035 = vsel %vm389, %v1033, %v1034
          %v1037 = vadd.f32 %v1027, %v1035
          %s1038 = sld [smem:[#allocation9 + $0x27]]
          %v1039 = vstv %s1038
          %v1040 = vmul.f32 %v1039, %v349
          %1042 = vrot.lane.b32.xlu0 %v1040, 48
          %v1043 = vpop.permute.xlu0 %1042
          %v1044 = vrot.slane %v1043, 1
          %v1045 = vsel %vm400, %v1043, %v1044
          %v1047 = vadd.f32 %v1037, %v1045
          %s1048 = sld [smem:[#allocation9 + $0x2e]]
          %v1049 = vstv %s1048
          %v1050 = vmul.f32 %v1049, %v349
          %1052 = vrot.lane.b32.xlu0 %v1050, 32
          %v1053 = vpop.permute.xlu0 %1052
          %v1054 = vrot.slane %v1053, 1
          %v1055 = vsel %vm411, %v1053, %v1054
          %v1057 = vadd.f32 %v1047, %v1055
          %s1058 = sld [smem:[#allocation9 + $0x35]]
          %v1059 = vstv %s1058
          %v1060 = vmul.f32 %v1059, %v421
          %v1061 = vadd.f32 %v1057, %v1060
          %s1062 = sld [smem:[#allocation9 + $0x3c]]
          %v1063 = vstv %s1062
          %v1064 = vmul.f32 %v1063, %v421
          %1066 = vrot.lane.b32.xlu0 %v1064, 112
          %v1067 = vpop.permute.xlu0 %1066
          %v1068 = vrot.slane %v1067, 1
          %v1069 = vsel %vm356, %v1067, %v1068
          %v1071 = vadd.f32 %v1061, %v1069
          %s1072 = sld [smem:[#allocation9 + $0x43]]
          %v1073 = vstv %s1072
          %v1074 = vmul.f32 %v1073, %v421
          %1076 = vrot.lane.b32.xlu0 %v1074, 96
          %v1077 = vpop.permute.xlu0 %1076
          %v1078 = vrot.slane %v1077, 1
          %v1079 = vsel %vm367, %v1077, %v1078
          %v1081 = vadd.f32 %v1071, %v1079
          %s1082 = sld [smem:[#allocation9 + $0x4a]]
          %v1083 = vstv %s1082
          %v1084 = vmul.f32 %v1083, %v421
          %1086 = vrot.lane.b32.xlu0 %v1084, 80
          %v1087 = vpop.permute.xlu0 %1086
          %v1088 = vrot.slane %v1087, 1
          %v1089 = vsel %vm378, %v1087, %v1088
          %v1091 = vadd.f32 %v1081, %v1089
          %s1092 = sld [smem:[#allocation9 + $0x51]]
          %v1093 = vstv %s1092
          %v1094 = vmul.f32 %v1093, %v421
          %1096 = vrot.lane.b32.xlu0 %v1094, 64
          %v1097 = vpop.permute.xlu0 %1096
          %v1098 = vrot.slane %v1097, 1
          %v1099 = vsel %vm389, %v1097, %v1098
          %v1101 = vadd.f32 %v1091, %v1099
          %s1102 = sld [smem:[#allocation9 + $0x58]]
          %v1103 = vstv %s1102
          %v1104 = vmul.f32 %v1103, %v421
          %1106 = vrot.lane.b32.xlu0 %v1104, 48
          %v1107 = vpop.permute.xlu0 %1106
          %v1108 = vrot.slane %v1107, 1
          %v1109 = vsel %vm400, %v1107, %v1108
          %v1111 = vadd.f32 %v1101, %v1109
          %s1112 = sld [smem:[#allocation9 + $0x5f]]
          %v1113 = vstv %s1112
          %v1114 = vmul.f32 %v1113, %v421
          %1116 = vrot.lane.b32.xlu0 %v1114, 32
          %v1117 = vpop.permute.xlu0 %1116
          %v1118 = vrot.slane %v1117, 1
          %v1119 = vsel %vm411, %v1117, %v1118
          %v1121 = vadd.f32 %v1111, %v1119
          %v1123 = vlaneseq
          %v1124 = vshrl.u32 %v1123, 7
          %v1125 = vsub.s32 0, %v1124
          %v1126 = vrot.slane %v1121, %v1125
          %v1127 = vlaneseq
          %v1128 = vshrl.u32 %v1127, 7
          %v1129 = vsub.s32 1, %v1128
          %v1130 = vrot.slane %v1121, %v1129
          %v1131 = vlaneseq
          %v1132 = vshrl.u32 %v1131, 7
          %v1133 = vsub.s32 2, %v1132
          %v1134 = vrot.slane %v1121, %v1133
          %1135 = vrot.lane.b32.xlu0 %v1126, 124
          %v1136 = vpop.permute.xlu0 %1135
          %1137 = vrot.lane.b32.xlu0 %v1130, 124
          %v1138 = vpop.permute.xlu0 %1137
          %1139 = vrot.lane.b32.xlu0 %v1134, 124
          %v1140 = vpop.permute.xlu0 %1139
          %vm1141 = vcmask 1014784
          %v1142 = vsel %vm1141, %v1136, %v1138
          %v1143 = vsel %vm1141, %v1138, %v1140
          %v1146 = vsel %vm992, %v1142, 0.0
          %v1147 = vsel %vm993, %v1143, 0.0
          %v1148 = vadd.f32 %v984, %v1146
          %v1149 = vadd.f32 %v985, %v1147
          %v1150 = vadd.s32 %v333, 2
          %v1151 = vadd.s32 %v334, 2
          %vm1152 = vcmp.ge.s32.totalorder %v1150, 0
          %vm1153 = vcmp.ge.s32.totalorder %v1151, 0
          %vm1154 = vcmp.lt.s32.totalorder %v1150, 16
          %vm1155 = vcmp.lt.s32.totalorder %v1151, 16
          %vm1156 = vmand %vm1152, %vm1154
          %vm1157 = vmand %vm1153, %vm1155
          %s1158 = sld [smem:[#allocation9 + $0x5]]
          %v1159 = vstv %s1158
          %v1160 = vmul.f32 %v1159, %v349
          %v1161 = vadd.f32 %v1160, 0.0
          %s1162 = sld [smem:[#allocation9 + $0xc]]
          %v1163 = vstv %s1162
          %v1164 = vmul.f32 %v1163, %v349
          %1166 = vrot.lane.b32.xlu0 %v1164, 112
          %v1167 = vpop.permute.xlu0 %1166
          %v1168 = vrot.slane %v1167, 1
          %v1169 = vsel %vm356, %v1167, %v1168
          %v1171 = vadd.f32 %v1161, %v1169
          %s1172 = sld [smem:[#allocation9 + $0x13]]
          %v1173 = vstv %s1172
          %v1174 = vmul.f32 %v1173, %v349
          %1176 = vrot.lane.b32.xlu0 %v1174, 96
          %v1177 = vpop.permute.xlu0 %1176
          %v1178 = vrot.slane %v1177, 1
          %v1179 = vsel %vm367, %v1177, %v1178
          %v1181 = vadd.f32 %v1171, %v1179
          %s1182 = sld [smem:[#allocation9 + $0x1a]]
          %v1183 = vstv %s1182
          %v1184 = vmul.f32 %v1183, %v349
          %1186 = vrot.lane.b32.xlu0 %v1184, 80
          %v1187 = vpop.permute.xlu0 %1186
          %v1188 = vrot.slane %v1187, 1
          %v1189 = vsel %vm378, %v1187, %v1188
          %v1191 = vadd.f32 %v1181, %v1189
          %s1192 = sld [smem:[#allocation9 + $0x21]]
          %v1193 = vstv %s1192
          %v1194 = vmul.f32 %v1193, %v349
          %1196 = vrot.lane.b32.xlu0 %v1194, 64
          %v1197 = vpop.permute.xlu0 %1196
          %v1198 = vrot.slane %v1197, 1
          %v1199 = vsel %vm389, %v1197, %v1198
          %v1201 = vadd.f32 %v1191, %v1199
          %s1202 = sld [smem:[#allocation9 + $0x28]]
          %v1203 = vstv %s1202
          %v1204 = vmul.f32 %v1203, %v349
          %1206 = vrot.lane.b32.xlu0 %v1204, 48
          %v1207 = vpop.permute.xlu0 %1206
          %v1208 = vrot.slane %v1207, 1
          %v1209 = vsel %vm400, %v1207, %v1208
          %v1211 = vadd.f32 %v1201, %v1209
          %s1212 = sld [smem:[#allocation9 + $0x2f]]
          %v1213 = vstv %s1212
          %v1214 = vmul.f32 %v1213, %v349
          %1216 = vrot.lane.b32.xlu0 %v1214, 32
          %v1217 = vpop.permute.xlu0 %1216
          %v1218 = vrot.slane %v1217, 1
          %v1219 = vsel %vm411, %v1217, %v1218
          %v1221 = vadd.f32 %v1211, %v1219
          %s1222 = sld [smem:[#allocation9 + $0x36]]
          %v1223 = vstv %s1222
          %v1224 = vmul.f32 %v1223, %v421
          %v1225 = vadd.f32 %v1221, %v1224
          %s1226 = sld [smem:[#allocation9 + $0x3d]]
          %v1227 = vstv %s1226
          %v1228 = vmul.f32 %v1227, %v421
          %1230 = vrot.lane.b32.xlu0 %v1228, 112
          %v1231 = vpop.permute.xlu0 %1230
          %v1232 = vrot.slane %v1231, 1
          %v1233 = vsel %vm356, %v1231, %v1232
          %v1235 = vadd.f32 %v1225, %v1233
          %s1236 = sld [smem:[#allocation9 + $0x44]]
          %v1237 = vstv %s1236
          %v1238 = vmul.f32 %v1237, %v421
          %1240 = vrot.lane.b32.xlu0 %v1238, 96
          %v1241 = vpop.permute.xlu0 %1240
          %v1242 = vrot.slane %v1241, 1
          %v1243 = vsel %vm367, %v1241, %v1242
          %v1245 = vadd.f32 %v1235, %v1243
          %s1246 = sld [smem:[#allocation9 + $0x4b]]
          %v1247 = vstv %s1246
          %v1248 = vmul.f32 %v1247, %v421
          %1250 = vrot.lane.b32.xlu0 %v1248, 80
          %v1251 = vpop.permute.xlu0 %1250
          %v1252 = vrot.slane %v1251, 1
          %v1253 = vsel %vm378, %v1251, %v1252
          %v1255 = vadd.f32 %v1245, %v1253
          %s1256 = sld [smem:[#allocation9 + $0x52]]
          %v1257 = vstv %s1256
          %v1258 = vmul.f32 %v1257, %v421
          %1260 = vrot.lane.b32.xlu0 %v1258, 64
          %v1261 = vpop.permute.xlu0 %1260
          %v1262 = vrot.slane %v1261, 1
          %v1263 = vsel %vm389, %v1261, %v1262
          %v1265 = vadd.f32 %v1255, %v1263
          %s1266 = sld [smem:[#allocation9 + $0x59]]
          %v1267 = vstv %s1266
          %v1268 = vmul.f32 %v1267, %v421
          %1270 = vrot.lane.b32.xlu0 %v1268, 48
          %v1271 = vpop.permute.xlu0 %1270
          %v1272 = vrot.slane %v1271, 1
          %v1273 = vsel %vm400, %v1271, %v1272
          %v1275 = vadd.f32 %v1265, %v1273
          %s1276 = sld [smem:[#allocation9 + $0x60]]
          %v1277 = vstv %s1276
          %v1278 = vmul.f32 %v1277, %v421
          %1280 = vrot.lane.b32.xlu0 %v1278, 32
          %v1281 = vpop.permute.xlu0 %1280
          %v1282 = vrot.slane %v1281, 1
          %v1283 = vsel %vm411, %v1281, %v1282
          %v1285 = vadd.f32 %v1275, %v1283
          %v1287 = vlaneseq
          %v1288 = vshrl.u32 %v1287, 7
          %v1289 = vsub.s32 0, %v1288
          %v1290 = vrot.slane %v1285, %v1289
          %v1291 = vlaneseq
          %v1292 = vshrl.u32 %v1291, 7
          %v1293 = vsub.s32 1, %v1292
          %v1294 = vrot.slane %v1285, %v1293
          %v1295 = vlaneseq
          %v1296 = vshrl.u32 %v1295, 7
          %v1297 = vsub.s32 2, %v1296
          %v1298 = vrot.slane %v1285, %v1297
          %1299 = vrot.lane.b32.xlu0 %v1290, 123
          %v1300 = vpop.permute.xlu0 %1299
          %1301 = vrot.lane.b32.xlu0 %v1294, 123
          %v1302 = vpop.permute.xlu0 %1301
          %1303 = vrot.lane.b32.xlu0 %v1298, 123
          %v1304 = vpop.permute.xlu0 %1303
          %vm1305 = vcmask 1006592
          %v1306 = vsel %vm1305, %v1300, %v1302
          %v1307 = vsel %vm1305, %v1302, %v1304
          %v1310 = vsel %vm1156, %v1306, 0.0
          %v1311 = vsel %vm1157, %v1307, 0.0
          %v1312 = vadd.f32 %v1148, %v1310
          %v1313 = vadd.f32 %v1149, %v1311
          %v1314 = vadd.s32 %v333, 3
          %v1315 = vadd.s32 %v334, 3
          %vm1316 = vcmp.ge.s32.totalorder %v1314, 0
          %vm1317 = vcmp.ge.s32.totalorder %v1315, 0
          %vm1318 = vcmp.lt.s32.totalorder %v1314, 16
          %vm1319 = vcmp.lt.s32.totalorder %v1315, 16
          %vm1320 = vmand %vm1316, %vm1318
          %vm1321 = vmand %vm1317, %vm1319
          %s1322 = sld [smem:[#allocation9 + $0x6]]
          %v1323 = vstv %s1322
          %v1324 = vmul.f32 %v1323, %v349
          %v1325 = vadd.f32 %v1324, 0.0
          %s1326 = sld [smem:[#allocation9 + $0xd]]
          %v1327 = vstv %s1326
          %v1328 = vmul.f32 %v1327, %v349
          %1330 = vrot.lane.b32.xlu0 %v1328, 112
          %v1331 = vpop.permute.xlu0 %1330
          %v1332 = vrot.slane %v1331, 1
          %v1333 = vsel %vm356, %v1331, %v1332
          %v1335 = vadd.f32 %v1325, %v1333
          %s1336 = sld [smem:[#allocation9 + $0x14]]
          %v1337 = vstv %s1336
          %v1338 = vmul.f32 %v1337, %v349
          %1340 = vrot.lane.b32.xlu0 %v1338, 96
          %v1341 = vpop.permute.xlu0 %1340
          %v1342 = vrot.slane %v1341, 1
          %v1343 = vsel %vm367, %v1341, %v1342
          %v1345 = vadd.f32 %v1335, %v1343
          %s1346 = sld [smem:[#allocation9 + $0x1b]]
          %v1347 = vstv %s1346
          %v1348 = vmul.f32 %v1347, %v349
          %1350 = vrot.lane.b32.xlu0 %v1348, 80
          %v1351 = vpop.permute.xlu0 %1350
          %v1352 = vrot.slane %v1351, 1
          %v1353 = vsel %vm378, %v1351, %v1352
          %v1355 = vadd.f32 %v1345, %v1353
          %s1356 = sld [smem:[#allocation9 + $0x22]]
          %v1357 = vstv %s1356
          %v1358 = vmul.f32 %v1357, %v349
          %1360 = vrot.lane.b32.xlu0 %v1358, 64
          %v1361 = vpop.permute.xlu0 %1360
          %v1362 = vrot.slane %v1361, 1
          %v1363 = vsel %vm389, %v1361, %v1362
          %v1365 = vadd.f32 %v1355, %v1363
          %s1366 = sld [smem:[#allocation9 + $0x29]]
          %v1367 = vstv %s1366
          %v1368 = vmul.f32 %v1367, %v349
          %1370 = vrot.lane.b32.xlu0 %v1368, 48
          %v1371 = vpop.permute.xlu0 %1370
          %v1372 = vrot.slane %v1371, 1
          %v1373 = vsel %vm400, %v1371, %v1372
          %v1375 = vadd.f32 %v1365, %v1373
          %s1376 = sld [smem:[#allocation9 + $0x30]]
          %v1377 = vstv %s1376
          %v1378 = vmul.f32 %v1377, %v349
          %1380 = vrot.lane.b32.xlu0 %v1378, 32
          %v1381 = vpop.permute.xlu0 %1380
          %v1382 = vrot.slane %v1381, 1
          %v1383 = vsel %vm411, %v1381, %v1382
          %v1385 = vadd.f32 %v1375, %v1383
          %s1386 = sld [smem:[#allocation9 + $0x37]]
          %v1387 = vstv %s1386
          %v1388 = vmul.f32 %v1387, %v421
          %v1389 = vadd.f32 %v1385, %v1388
          %s1390 = sld [smem:[#allocation9 + $0x3e]]
          %v1391 = vstv %s1390
          %v1392 = vmul.f32 %v1391, %v421
          %1394 = vrot.lane.b32.xlu0 %v1392, 112
          %v1395 = vpop.permute.xlu0 %1394
          %v1396 = vrot.slane %v1395, 1
          %v1397 = vsel %vm356, %v1395, %v1396
          %v1399 = vadd.f32 %v1389, %v1397
          %s1400 = sld [smem:[#allocation9 + $0x45]]
          %v1401 = vstv %s1400
          %v1402 = vmul.f32 %v1401, %v421
          %1404 = vrot.lane.b32.xlu0 %v1402, 96
          %v1405 = vpop.permute.xlu0 %1404
          %v1406 = vrot.slane %v1405, 1
          %v1407 = vsel %vm367, %v1405, %v1406
          %v1409 = vadd.f32 %v1399, %v1407
          %s1410 = sld [smem:[#allocation9 + $0x4c]]
          %v1411 = vstv %s1410
          %v1412 = vmul.f32 %v1411, %v421
          %1414 = vrot.lane.b32.xlu0 %v1412, 80
          %v1415 = vpop.permute.xlu0 %1414
          %v1416 = vrot.slane %v1415, 1
          %v1417 = vsel %vm378, %v1415, %v1416
          %v1419 = vadd.f32 %v1409, %v1417
          %s1420 = sld [smem:[#allocation9 + $0x53]]
          %v1421 = vstv %s1420
          %v1422 = vmul.f32 %v1421, %v421
          %1424 = vrot.lane.b32.xlu0 %v1422, 64
          %v1425 = vpop.permute.xlu0 %1424
          %v1426 = vrot.slane %v1425, 1
          %v1427 = vsel %vm389, %v1425, %v1426
          %v1429 = vadd.f32 %v1419, %v1427
          %s1430 = sld [smem:[#allocation9 + $0x5a]]
          %v1431 = vstv %s1430
          %v1432 = vmul.f32 %v1431, %v421
          %1434 = vrot.lane.b32.xlu0 %v1432, 48
          %v1435 = vpop.permute.xlu0 %1434
          %v1436 = vrot.slane %v1435, 1
          %v1437 = vsel %vm400, %v1435, %v1436
          %v1439 = vadd.f32 %v1429, %v1437
          %s1440 = sld [smem:[#allocation9 + $0x61]]
          %v1441 = vstv %s1440
          %v1442 = vmul.f32 %v1441, %v421
          %1444 = vrot.lane.b32.xlu0 %v1442, 32
          %v1445 = vpop.permute.xlu0 %1444
          %v1446 = vrot.slane %v1445, 1
          %v1447 = vsel %vm411, %v1445, %v1446
          %v1449 = vadd.f32 %v1439, %v1447
          %v1451 = vlaneseq
          %v1452 = vshrl.u32 %v1451, 7
          %v1453 = vsub.s32 0, %v1452
          %v1454 = vrot.slane %v1449, %v1453
          %v1455 = vlaneseq
          %v1456 = vshrl.u32 %v1455, 7
          %v1457 = vsub.s32 1, %v1456
          %v1458 = vrot.slane %v1449, %v1457
          %v1459 = vlaneseq
          %v1460 = vshrl.u32 %v1459, 7
          %v1461 = vsub.s32 2, %v1460
          %v1462 = vrot.slane %v1449, %v1461
          %1463 = vrot.lane.b32.xlu0 %v1454, 122
          %v1464 = vpop.permute.xlu0 %1463
          %1465 = vrot.lane.b32.xlu0 %v1458, 122
          %v1466 = vpop.permute.xlu0 %1465
          %1467 = vrot.lane.b32.xlu0 %v1462, 122
          %v1468 = vpop.permute.xlu0 %1467
          %vm1469 = vcmask 998400
          %v1470 = vsel %vm1469, %v1464, %v1466
          %v1471 = vsel %vm1469, %v1466, %v1468
          %v1474 = vsel %vm1320, %v1470, 0.0
          %v1475 = vsel %vm1321, %v1471, 0.0
          %v1476 = vadd.f32 %v1312, %v1474
          %v1477 = vadd.f32 %v1313, %v1475
          %v1478 = vxor.u32 %v1476, 2147483648
          %v1479 = vxor.u32 %v1477, 2147483648
          %v1480 = vmul.f32 %v1478, 1.442695
          %v1481 = vpow.pop %v1480
          %v1482 = vmul.f32 %v1479, 1.442695
          %v1483 = vpow.pop %v1482
          %v1484 = vadd.f32 %v1481, 1.0
          %v1485 = vadd.f32 %v1483, 1.0
          %v1486 = vrcp.pop %v1484
          %v1487 = vmul.f32 1.0, %v1486
          %v1488 = vrcp.pop %v1485
          %v1489 = vmul.f32 1.0, %v1488
          %v1492 = vcombine.low %v1487, %v1489
          %v1494 = vunpack.c.l.s4 1966171168
          %v1495 = vunpack.c.0.s8 %v1494
          %v1496 = vlaneseq
          %v1497 = vshrl.u32 %v1496, 7
          %v1498 = vsub.s32 %v1495, %v1497
          %v1499 = vrot.slane %v1492, %v1498
          %v1501 = vunpack.c.l.s4 1966171168
          %v1502 = vunpack.c.0.s8 %v1501
          %v1503 = vlaneseq
          %v1504 = vshrl.u32 %v1503, 7
          %v1505 = vsub.s32 %v1502, %v1504
          %v1506 = vrot.slane %v1499, %v1505
          %1508 = vst.msk [vmem:[%s189] sm:$0x3] %vm276, %v1506
        $region44: #{tpu_custom_call.1} parent=27 // pred_fallthru
          _
        %s1509 = sand.u32 %s89, 1
        %s1510 = scalar_lea.sflag [#allocation7], %s1509
        %s1511 = sand.u32 %s89, 1
        %s1512 = smul.addr %s1511, 2
        %s1513 = scalar_lea.vmem [#allocation10], %s1512
        // Predicated region
        $region45: #{tpu_custom_call.1} parent=27 // pred_check
          %p1514 = pneg %p99
        $region46: #{tpu_custom_call.1} parent=27 // pred_check_branch
          %1516 = sbr.rel (%p1514) target = $region48
        $region47: #{tpu_custom_call.1} parent=27 // pred_region
          %s1518 = ssub.s32 32, 32
          %1519 = vsyncadd %s1510, %s1518
          %s1520 = smul.addr %s24, 2
          %s1521 = smul.addr %s1520, 16
          %s1522 = scalar_lea.hbm %s2, %s1521
          %s1524 = sshll.u32 %s1513, 4
          %s1525 = int_to_ptr.vmem [resolvable:$true] %s1524
          %1527 = dma.vmem_to_hbm [thread:$0]  %s1525, 32, %s1522, %s1510
        $region48: #{tpu_custom_call.1} parent=27 // pred_fallthru
          _
      $region28: #{tpu_custom_call.1} parent=5 // pred_fallthru
        _
      %p1528 = scmp.le.s32.totalorder 2, %s15
      // Predicated region
      $region49: #{tpu_custom_call.1} parent=5 // pred_check
        %p1529 = pneg %p1528
      $region50: #{tpu_custom_call.1} parent=5 // pred_check_branch
        %1531 = sbr.rel (%p1529) target = $region52
      $region51: #{tpu_custom_call.1} parent=5 // pred_region
        %s1532 = ssub.s32 %s15, 2
        // Predicated region
        $region53: #{tpu_custom_call.1} parent=51 // pred_check
          %p1533 = pneg %p105
        $region54: #{tpu_custom_call.1} parent=51 // pred_check_branch
          %1535 = sbr.rel (%p1533) target = $region56
        $region55: #{tpu_custom_call.1} parent=51 // pred_region
          %s1536 = sand.u32 %s90, 1
          %s1537 = scalar_lea.sflag [#allocation7], %s1536
          %s1538 = sand.u32 %s90, 1
          %s1539 = smul.addr %s1538, 2
          %s1540 = scalar_lea.vmem [#allocation10], %s1539
          %1541 = dma.done %s1537, 32
        $region56: #{tpu_custom_call.1} parent=51 // pred_fallthru
          _
      $region52: #{tpu_custom_call.1} parent=5 // pred_fallthru
        _
    $region6: #{tpu_custom_call.1} parent=1 // loop_footer
      %s19 = sadd.s32 1, %s15
    $region7: #{tpu_custom_call.1} parent=1 // loop_footer_branch
      %14 = sbr.rel target = $region3
    $region8: #{tpu_custom_call.1} parent=1 // loop_exit
      _
    %1542 = vsyncpa [#allocation6], 1
    %s1543 = scalar_lea.sflag [#allocation6], 1
    %1544 = vsyncpa %s1543, 1
    %1545 = vsyncpa [#allocation7], 1
    %s1546 = scalar_lea.sflag [#allocation7], 1
    %1547 = vsyncpa %s1546, 1
    %1548 = vsyncpa [#allocation8], 1
    %s1549 = scalar_lea.sflag [#allocation8], 1
    %1550 = vsyncpa %s1549, 1

</llo_original>
